<compile_context>
chip_gen: v6e
topology: v6e:2x2x1
jax: 0.10.0
libtpu: 0.0.40
codegen_flags: <defaults>
</compile_context>

<pallas_src>
import jax
import jax.numpy as jnp
import numpy as np
from jax.experimental import pallas as pl
from jax.experimental.pallas import tpu as pltpu

D_IN = 512   # ffn in / conv1 in-channels
D_HID = 256  # ffn hidden
D_C1 = 256   # conv1 out-channels (per head)
D_C2 = 128   # conv2 out-channels (per head)


def _mish(x):
    # mish(x) = x * tanh(softplus(x)) = x * ((1+e^x)^2 - 1) / ((1+e^x)^2 + 1)
    # Clamp the exp argument: for x >= 20 the ratio is exactly 1.0 in f32.
    t = jnp.exp(jnp.minimum(x, 20.0))
    u = (1.0 + t) * (1.0 + t)
    return x * ((u - 1.0) / (u + 1.0))


def moment_kernel(qv_ref, hv_ref,
                  w1_ref, b1_ref, w2_ref, b2_ref,
                  wh1_ref, bh1_ref, wh2_ref, bh2_ref,
                  sel_ref, out_ref):
    cdt = w1_ref.dtype  # compute dtype of the matmul operands (f32 or bf16)

    # ---- ffn: Linear(512,256) -> Mish -> Linear(256,512) -> Mish ----
    qv = qv_ref[...]
    h1 = _mish(jnp.dot(qv.astype(cdt), w1_ref[...],
                       preferred_element_type=jnp.float32) + b1_ref[...])
    h2 = _mish(jnp.dot(h1.astype(cdt), w2_ref[...],
                       preferred_element_type=jnp.float32) + b2_ref[...])

    # ---- QHv = Qv * Hv  (the .view(bs, 512, 1) is layout only) ----
    q = h2 * hv_ref[...]

    # ---- fused heads: Conv1d(k=3, pad=1) on L=1 == center-tap matmul.
    # conv1 of both heads concatenated on N -> (tb, 512);
    # conv2 of both heads block-diagonal      -> (tb, 256) = [start | end].
    c1 = _mish(jnp.dot(q.astype(cdt), wh1_ref[...],
                       preferred_element_type=jnp.float32) + bh1_ref[...])
    c2 = _mish(jnp.dot(c1.astype(cdt), wh2_ref[...],
                       preferred_element_type=jnp.float32) + bh2_ref[...])

    # ---- AdaptiveAvgPool2d(1): mean over the 128 channels of each head,
    # done as one MXU matmul with a block-diagonal 1/128 selector -> (tb, 2).
    out_ref[...] = jnp.dot(c2, sel_ref[...], preferred_element_type=jnp.float32)


def _round_up(x, m):
    return ((x + m - 1) // m) * m


def moment_localization(Qv, Hv, kparams, *, tb=None):
    """kparams: 9 kernel-layout params from to_kernel_params()."""
    assert Qv.shape == Hv.shape and Qv.shape[1] == D_IN
    B = Qv.shape[0]
    # Default batch tile: fill MXU rows (256 also fine on v5e's 128-wide MXU —
    # just two passes), but never exceed the (sublane-rounded) batch so small
    # batches run as a single grid step.
    if tb is None:
        tb = min(_round_up(B, 8), 256)
    Bp = _round_up(B, tb)
    if Bp != B:
        Qv = jnp.pad(Qv, ((0, Bp - B), (0, 0)))
        Hv = jnp.pad(Hv, ((0, Bp - B), (0, 0)))
    grid = (Bp // tb,)

    def batch_spec(cols):
        return pl.BlockSpec((tb, cols), lambda i: (i, 0))

    def full_spec(arr):
        # Constant block index -> weights fetched once, stay resident in VMEM.
        return pl.BlockSpec(arr.shape, lambda i: (0, 0))

    in_specs = [batch_spec(D_IN), batch_spec(D_IN)] + [full_spec(a) for a in kparams]
    out_specs = pl.BlockSpec((tb, 2), lambda i: (i, 0))
    out_shape = jax.ShapeDtypeStruct((Bp, 2), jnp.float32)

    out = pl.pallas_call(
        moment_kernel,
        out_shape=out_shape,
        grid=grid,
        in_specs=in_specs,
        out_specs=out_specs,
        compiler_params=pltpu.CompilerParams(
            dimension_semantics=("parallel",)),
    )(Qv, Hv, *kparams)

    return out[:B, 0:1], out[:B, 1:2]


# ---------------------------------------------------------------------------
# Deterministic parameter construction (PyTorch-shaped) + pure-JAX reference.
# ---------------------------------------------------------------------------
def make_params(key):
    ks = jax.random.split(key, 12)
    s = 0.04
    p = {
        # ffn: Linear(512,256), Linear(256,512)  -- PyTorch layout (out, in)
        "w1": jax.random.normal(ks[0], (D_HID, D_IN), jnp.float32) * s,
        "b1": jax.random.normal(ks[1], (D_HID,), jnp.float32) * s,
        "w2": jax.random.normal(ks[2], (D_IN, D_HID), jnp.float32) * s,
        "b2": jax.random.normal(ks[3], (D_IN,), jnp.float32) * s,
        # start_head convs -- PyTorch layout (out, in, k=3)
        "ws1": jax.random.normal(ks[4], (D_C1, D_IN, 3), jnp.float32) * s,
        "bs1": jax.random.normal(ks[5], (D_C1,), jnp.float32) * s,
        "ws2": jax.random.normal(ks[6], (D_C2, D_C1, 3), jnp.float32) * s,
        "bs2": jax.random.normal(ks[7], (D_C2,), jnp.float32) * s,
        # end_head convs
        "we1": jax.random.normal(ks[8], (D_C1, D_IN, 3), jnp.float32) * s,
        "be1": jax.random.normal(ks[9], (D_C1,), jnp.float32) * s,
        "we2": jax.random.normal(ks[10], (D_C2, D_C1, 3), jnp.float32) * s,
        "be2": jax.random.normal(ks[11], (D_C2,), jnp.float32) * s,
    }
    return p


def to_kernel_params(p, dtype=jnp.float32):
    """Convert PyTorch-layout params to fused kernel layout.

    Linear: (out,in) -> (in,out).  Conv1d on L=1: center tap (out,in,3)[:,:,1].
    Heads fused: conv1 concatenated on N (512,512); conv2 block-diagonal
    (512,256); channel means as a (256,2) block-diagonal 1/128 selector.
    `dtype` is the MXU operand dtype (f32 or bf16); biases/selector stay f32.
    """
    wh1 = jnp.concatenate([p["ws1"][:, :, 1].T, p["we1"][:, :, 1].T], axis=1)
    bh1 = jnp.concatenate([p["bs1"], p["be1"]])[None, :]            # (1, 512)
    z = jnp.zeros((D_C1, D_C2), jnp.float32)
    wh2 = jnp.block([[p["ws2"][:, :, 1].T, z],
                     [z, p["we2"][:, :, 1].T]])                     # (512, 256)
    bh2 = jnp.concatenate([p["bs2"], p["be2"]])[None, :]            # (1, 256)
    sel = jnp.zeros((2 * D_C2, 2), jnp.float32)
    sel = sel.at[:D_C2, 0].set(1.0 / D_C2).at[D_C2:, 1].set(1.0 / D_C2)

    cast = lambda w: w.astype(dtype)
    return (
        cast(p["w1"].T), p["b1"][None, :],
        cast(p["w2"].T), p["b2"][None, :],
        cast(wh1), bh1,
        cast(wh2), bh2,
        sel,
    )


def ref_forward(Qv, Hv, p):
    """Pure-JAX f32 reference that emulates the PyTorch ops literally
    (full 3-tap conv on the zero-padded length-1 sequence, tanh/softplus mish)."""
    def mish(x):
        return x * jnp.tanh(jax.nn.softplus(x))

    h = mish(Qv @ p["w1"].T + p["b1"])
    h = mish(h @ p["w2"].T + p["b2"])
    q = h * Hv                                   # (B, 512)
    x = q[:, :, None]                            # (B, 512, 1)  NCL

    def head(wc1, bc1, wc2, bc2):
        xp = jnp.pad(x, ((0, 0), (0, 0), (1, 1)))            # (B, 512, 3)
        c1 = mish(jnp.einsum("bck,ock->bo", xp, wc1) + bc1)   # (B, 256)
        c1p = jnp.pad(c1[:, :, None], ((0, 0), (0, 0), (1, 1)))
        c2 = mish(jnp.einsum("bck,ock->bo", c1p, wc2) + bc2)  # (B, 128)
        # AdaptiveAvgPool2d(1) on 3-D (B, 128, 1) -> (B, 1, 1) -> view (B, 1)
        return jnp.mean(c2, axis=1, keepdims=True)

    return (head(p["ws1"], p["bs1"], p["ws2"], p["bs2"]),
            head(p["we1"], p["be1"], p["we2"], p["be2"]))


if __name__ == "__main__":
    key = jax.random.PRNGKey(0)
    k_qv, k_hv, k_p = jax.random.split(key, 3)

    B = 16
    Qv = jax.random.normal(k_qv, (B, D_IN), jnp.float32)
    Hv = jax.random.normal(k_hv, (B, D_IN), jnp.float32)

    params = make_params(k_p)
    r_start, r_end = ref_forward(Qv, Hv, params)

    # --- f32 path, single-tile grid (tb = B = 16) ---
    kp_f32 = to_kernel_params(params, jnp.float32)
    p_start, p_end = moment_localization(Qv, Hv, kp_f32)
    jax.block_until_ready((p_start, p_end))
    np.testing.assert_allclose(np.asarray(p_start), np.asarray(r_start),
                               rtol=2e-5, atol=2e-5)
    np.testing.assert_allclose(np.asarray(p_end), np.asarray(r_end),
                               rtol=2e-5, atol=2e-5)

    # --- f32 path, multi-step grid (exercises pipelining / weight residency) ---
    p_s8, p_e8 = moment_localization(Qv, Hv, kp_f32, tb=8)
    jax.block_until_ready((p_s8, p_e8))
    np.testing.assert_allclose(np.asarray(p_s8), np.asarray(r_start),
                               rtol=2e-5, atol=2e-5)
    np.testing.assert_allclose(np.asarray(p_e8), np.asarray(r_end),
                               rtol=2e-5, atol=2e-5)

    # --- ragged batch (exercises the zero-pad / slice-back path) ---
    p_s12, p_e12 = moment_localization(Qv[:12], Hv[:12], kp_f32)
    jax.block_until_ready((p_s12, p_e12))
    np.testing.assert_allclose(np.asarray(p_s12), np.asarray(r_start[:12]),
                               rtol=2e-5, atol=2e-5)
    np.testing.assert_allclose(np.asarray(p_e12), np.asarray(r_end[:12]),
                               rtol=2e-5, atol=2e-5)

    # --- bf16 MXU path (v6e/v7x fast path); looser tolerance vs f32 reference ---
    kp_bf16 = to_kernel_params(params, jnp.bfloat16)
    p_sb, p_eb = moment_localization(Qv, Hv, kp_bf16)
    jax.block_until_ready((p_sb, p_eb))
    np.testing.assert_allclose(np.asarray(p_sb), np.asarray(r_start),
                               rtol=2e-2, atol=2e-2)
    np.testing.assert_allclose(np.asarray(p_eb), np.asarray(r_end),
                               rtol=2e-2, atol=2e-2)

    assert p_start.shape == (B, 1) and p_end.shape == (B, 1)
    print("KERNEL_OK")
</pallas_src>

<mosaic_0001>
module attributes {stable_mosaic.version = 11 : i64} {
  func.func @moment_kernel(%arg0: i32, %arg1: memref<16x512xf32, #tpu.memory_space<vmem>>, %arg2: memref<16x512xf32, #tpu.memory_space<vmem>>, %arg3: memref<512x256xf32, #tpu.memory_space<vmem>>, %arg4: memref<1x256xf32, #tpu.memory_space<vmem>>, %arg5: memref<256x512xf32, #tpu.memory_space<vmem>>, %arg6: memref<1x512xf32, #tpu.memory_space<vmem>>, %arg7: memref<512x512xf32, #tpu.memory_space<vmem>>, %arg8: memref<1x512xf32, #tpu.memory_space<vmem>>, %arg9: memref<512x256xf32, #tpu.memory_space<vmem>>, %arg10: memref<1x256xf32, #tpu.memory_space<vmem>>, %arg11: memref<256x2xf32, #tpu.memory_space<vmem>>, %arg12: memref<16x2xf32, #tpu.memory_space<vmem>>) attributes {dimension_semantics = [#tpu.dimension_semantics<parallel>], iteration_bounds = array<i64: 1>, scalar_prefetch = 0 : i64, scratch_operands = 0 : i64, tpu.core_type = #tpu.core_type<tc>, window_params = [{transform_indices = @transform_0, window_bounds = array<i64: 16, 512>}, {transform_indices = @transform_1, window_bounds = array<i64: 16, 512>}, {pipeline_mode = #tpu.pipeline_mode<synchronous>, transform_indices = @transform_2, window_bounds = array<i64: 512, 256>}, {pipeline_mode = #tpu.pipeline_mode<synchronous>, transform_indices = @transform_3, window_bounds = array<i64: 1, 256>}, {pipeline_mode = #tpu.pipeline_mode<synchronous>, transform_indices = @transform_4, window_bounds = array<i64: 256, 512>}, {pipeline_mode = #tpu.pipeline_mode<synchronous>, transform_indices = @transform_5, window_bounds = array<i64: 1, 512>}, {pipeline_mode = #tpu.pipeline_mode<synchronous>, transform_indices = @transform_6, window_bounds = array<i64: 512, 512>}, {pipeline_mode = #tpu.pipeline_mode<synchronous>, transform_indices = @transform_7, window_bounds = array<i64: 1, 512>}, {pipeline_mode = #tpu.pipeline_mode<synchronous>, transform_indices = @transform_8, window_bounds = array<i64: 512, 256>}, {pipeline_mode = #tpu.pipeline_mode<synchronous>, transform_indices = @transform_9, window_bounds = array<i64: 1, 256>}, {pipeline_mode = #tpu.pipeline_mode<synchronous>, transform_indices = @transform_10, window_bounds = array<i64: 256, 2>}, {transform_indices = @transform_11, window_bounds = array<i64: 16, 2>}]} {
    %c0 = arith.constant 0 : index
    %c0_0 = arith.constant 0 : index
    %0 = vector.load %arg1[%c0, %c0_0] : memref<16x512xf32, #tpu.memory_space<vmem>>, vector<16x512xf32>
    %c0_1 = arith.constant 0 : index
    %c0_2 = arith.constant 0 : index
    %1 = vector.load %arg3[%c0_1, %c0_2] : memref<512x256xf32, #tpu.memory_space<vmem>>, vector<512x256xf32>
    %cst = arith.constant dense<0.000000e+00> : vector<16x256xf32>
    %2 = tpu.matmul %0, %1, %cst {dimension_numbers = #tpu.dot_dimension_numbers<[1], [0], [0], [1], [0, 0, 1, 1], [], []>} : vector<16x512xf32>, vector<512x256xf32>, vector<16x256xf32> -> vector<16x256xf32>
    %c0_3 = arith.constant 0 : index
    %c0_4 = arith.constant 0 : index
    %3 = vector.load %arg4[%c0_3, %c0_4] : memref<1x256xf32, #tpu.memory_space<vmem>>, vector<1x256xf32>
    %4 = vector.broadcast %3 : vector<1x256xf32> to vector<16x256xf32>
    %5 = arith.addf %2, %4 : vector<16x256xf32>
    %cst_5 = arith.constant 2.000000e+01 : f32
    %6 = vector.broadcast %cst_5 : f32 to vector<16x256xf32>
    %7 = arith.minimumf %5, %6 : vector<16x256xf32>
    %8 = math.exp %7 : vector<16x256xf32>
    %cst_6 = arith.constant 1.000000e+00 : f32
    %9 = vector.broadcast %cst_6 : f32 to vector<16x256xf32>
    %10 = arith.addf %9, %8 : vector<16x256xf32>
    %cst_7 = arith.constant 1.000000e+00 : f32
    %11 = vector.broadcast %cst_7 : f32 to vector<16x256xf32>
    %12 = arith.addf %11, %8 : vector<16x256xf32>
    %13 = arith.mulf %10, %12 : vector<16x256xf32>
    %cst_8 = arith.constant 1.000000e+00 : f32
    %14 = vector.broadcast %cst_8 : f32 to vector<16x256xf32>
    %15 = arith.subf %13, %14 : vector<16x256xf32>
    %cst_9 = arith.constant 1.000000e+00 : f32
    %16 = vector.broadcast %cst_9 : f32 to vector<16x256xf32>
    %17 = arith.addf %13, %16 : vector<16x256xf32>
    %18 = arith.divf %15, %17 : vector<16x256xf32>
    %19 = arith.mulf %5, %18 : vector<16x256xf32>
    %c0_10 = arith.constant 0 : index
    %c0_11 = arith.constant 0 : index
    %20 = vector.load %arg5[%c0_10, %c0_11] : memref<256x512xf32, #tpu.memory_space<vmem>>, vector<256x512xf32>
    %cst_12 = arith.constant dense<0.000000e+00> : vector<16x512xf32>
    %21 = tpu.matmul %19, %20, %cst_12 {dimension_numbers = #tpu.dot_dimension_numbers<[1], [0], [0], [1], [0, 0, 1, 1], [], []>} : vector<16x256xf32>, vector<256x512xf32>, vector<16x512xf32> -> vector<16x512xf32>
    %c0_13 = arith.constant 0 : index
    %c0_14 = arith.constant 0 : index
    %22 = vector.load %arg6[%c0_13, %c0_14] : memref<1x512xf32, #tpu.memory_space<vmem>>, vector<1x512xf32>
    %23 = vector.broadcast %22 : vector<1x512xf32> to vector<16x512xf32>
    %24 = arith.addf %21, %23 : vector<16x512xf32>
    %cst_15 = arith.constant 2.000000e+01 : f32
    %25 = vector.broadcast %cst_15 : f32 to vector<16x512xf32>
    %26 = arith.minimumf %24, %25 : vector<16x512xf32>
    %27 = math.exp %26 : vector<16x512xf32>
    %cst_16 = arith.constant 1.000000e+00 : f32
    %28 = vector.broadcast %cst_16 : f32 to vector<16x512xf32>
    %29 = arith.addf %28, %27 : vector<16x512xf32>
    %cst_17 = arith.constant 1.000000e+00 : f32
    %30 = vector.broadcast %cst_17 : f32 to vector<16x512xf32>
    %31 = arith.addf %30, %27 : vector<16x512xf32>
    %32 = arith.mulf %29, %31 : vector<16x512xf32>
    %cst_18 = arith.constant 1.000000e+00 : f32
    %33 = vector.broadcast %cst_18 : f32 to vector<16x512xf32>
    %34 = arith.subf %32, %33 : vector<16x512xf32>
    %cst_19 = arith.constant 1.000000e+00 : f32
    %35 = vector.broadcast %cst_19 : f32 to vector<16x512xf32>
    %36 = arith.addf %32, %35 : vector<16x512xf32>
    %37 = arith.divf %34, %36 : vector<16x512xf32>
    %38 = arith.mulf %24, %37 : vector<16x512xf32>
    %c0_20 = arith.constant 0 : index
    %c0_21 = arith.constant 0 : index
    %39 = vector.load %arg2[%c0_20, %c0_21] : memref<16x512xf32, #tpu.memory_space<vmem>>, vector<16x512xf32>
    %40 = arith.mulf %38, %39 : vector<16x512xf32>
    %c0_22 = arith.constant 0 : index
    %c0_23 = arith.constant 0 : index
    %41 = vector.load %arg7[%c0_22, %c0_23] : memref<512x512xf32, #tpu.memory_space<vmem>>, vector<512x512xf32>
    %cst_24 = arith.constant dense<0.000000e+00> : vector<16x512xf32>
    %42 = tpu.matmul %40, %41, %cst_24 {dimension_numbers = #tpu.dot_dimension_numbers<[1], [0], [0], [1], [0, 0, 1, 1], [], []>} : vector<16x512xf32>, vector<512x512xf32>, vector<16x512xf32> -> vector<16x512xf32>
    %c0_25 = arith.constant 0 : index
    %c0_26 = arith.constant 0 : index
    %43 = vector.load %arg8[%c0_25, %c0_26] : memref<1x512xf32, #tpu.memory_space<vmem>>, vector<1x512xf32>
    %44 = vector.broadcast %43 : vector<1x512xf32> to vector<16x512xf32>
    %45 = arith.addf %42, %44 : vector<16x512xf32>
    %cst_27 = arith.constant 2.000000e+01 : f32
    %46 = vector.broadcast %cst_27 : f32 to vector<16x512xf32>
    %47 = arith.minimumf %45, %46 : vector<16x512xf32>
    %48 = math.exp %47 : vector<16x512xf32>
    %cst_28 = arith.constant 1.000000e+00 : f32
    %49 = vector.broadcast %cst_28 : f32 to vector<16x512xf32>
    %50 = arith.addf %49, %48 : vector<16x512xf32>
    %cst_29 = arith.constant 1.000000e+00 : f32
    %51 = vector.broadcast %cst_29 : f32 to vector<16x512xf32>
    %52 = arith.addf %51, %48 : vector<16x512xf32>
    %53 = arith.mulf %50, %52 : vector<16x512xf32>
    %cst_30 = arith.constant 1.000000e+00 : f32
    %54 = vector.broadcast %cst_30 : f32 to vector<16x512xf32>
    %55 = arith.subf %53, %54 : vector<16x512xf32>
    %cst_31 = arith.constant 1.000000e+00 : f32
    %56 = vector.broadcast %cst_31 : f32 to vector<16x512xf32>
    %57 = arith.addf %53, %56 : vector<16x512xf32>
    %58 = arith.divf %55, %57 : vector<16x512xf32>
    %59 = arith.mulf %45, %58 : vector<16x512xf32>
    %c0_32 = arith.constant 0 : index
    %c0_33 = arith.constant 0 : index
    %60 = vector.load %arg9[%c0_32, %c0_33] : memref<512x256xf32, #tpu.memory_space<vmem>>, vector<512x256xf32>
    %cst_34 = arith.constant dense<0.000000e+00> : vector<16x256xf32>
    %61 = tpu.matmul %59, %60, %cst_34 {dimension_numbers = #tpu.dot_dimension_numbers<[1], [0], [0], [1], [0, 0, 1, 1], [], []>} : vector<16x512xf32>, vector<512x256xf32>, vector<16x256xf32> -> vector<16x256xf32>
    %c0_35 = arith.constant 0 : index
    %c0_36 = arith.constant 0 : index
    %62 = vector.load %arg10[%c0_35, %c0_36] : memref<1x256xf32, #tpu.memory_space<vmem>>, vector<1x256xf32>
    %63 = vector.broadcast %62 : vector<1x256xf32> to vector<16x256xf32>
    %64 = arith.addf %61, %63 : vector<16x256xf32>
    %cst_37 = arith.constant 2.000000e+01 : f32
    %65 = vector.broadcast %cst_37 : f32 to vector<16x256xf32>
    %66 = arith.minimumf %64, %65 : vector<16x256xf32>
    %67 = math.exp %66 : vector<16x256xf32>
    %cst_38 = arith.constant 1.000000e+00 : f32
    %68 = vector.broadcast %cst_38 : f32 to vector<16x256xf32>
    %69 = arith.addf %68, %67 : vector<16x256xf32>
    %cst_39 = arith.constant 1.000000e+00 : f32
    %70 = vector.broadcast %cst_39 : f32 to vector<16x256xf32>
    %71 = arith.addf %70, %67 : vector<16x256xf32>
    %72 = arith.mulf %69, %71 : vector<16x256xf32>
    %cst_40 = arith.constant 1.000000e+00 : f32
    %73 = vector.broadcast %cst_40 : f32 to vector<16x256xf32>
    %74 = arith.subf %72, %73 : vector<16x256xf32>
    %cst_41 = arith.constant 1.000000e+00 : f32
    %75 = vector.broadcast %cst_41 : f32 to vector<16x256xf32>
    %76 = arith.addf %72, %75 : vector<16x256xf32>
    %77 = arith.divf %74, %76 : vector<16x256xf32>
    %78 = arith.mulf %64, %77 : vector<16x256xf32>
    %c0_42 = arith.constant 0 : index
    %c0_43 = arith.constant 0 : index
    %79 = vector.load %arg11[%c0_42, %c0_43] : memref<256x2xf32, #tpu.memory_space<vmem>>, vector<256x2xf32>
    %cst_44 = arith.constant dense<0.000000e+00> : vector<16x2xf32>
    %80 = tpu.matmul %78, %79, %cst_44 {dimension_numbers = #tpu.dot_dimension_numbers<[1], [0], [0], [1], [0, 0, 1, 1], [], []>} : vector<16x256xf32>, vector<256x2xf32>, vector<16x2xf32> -> vector<16x2xf32>
    %c0_45 = arith.constant 0 : index
    %c0_46 = arith.constant 0 : index
    %81 = vector.load %arg12[%c0_45, %c0_46] : memref<16x2xf32, #tpu.memory_space<vmem>>, vector<16x2xf32>
    tpu.vector_store %arg12[%c0_45, %c0_46], %80 {strides = array<i32>} : memref<16x2xf32, #tpu.memory_space<vmem>>, vector<16x2xf32>,
    return
  }
  func.func @transform_0(%arg0: i32) -> (i32, i32) {
    %c0_i32 = arith.constant 0 : i32
    %c0_i32_0 = arith.constant 0 : i32
    return %arg0, %c0_i32 : i32, i32
  }
  func.func @transform_1(%arg0: i32) -> (i32, i32) {
    %c0_i32 = arith.constant 0 : i32
    %c0_i32_0 = arith.constant 0 : i32
    return %arg0, %c0_i32 : i32, i32
  }
  func.func @transform_2(%arg0: i32) -> (i32, i32) {
    %c0_i32 = arith.constant 0 : i32
    %c0_i32_0 = arith.constant 0 : i32
    %c0_i32_1 = arith.constant 0 : i32
    return %c0_i32, %c0_i32_0 : i32, i32
  }
  func.func @transform_3(%arg0: i32) -> (i32, i32) {
    %c0_i32 = arith.constant 0 : i32
    %c0_i32_0 = arith.constant 0 : i32
    %c0_i32_1 = arith.constant 0 : i32
    return %c0_i32, %c0_i32_0 : i32, i32
  }
  func.func @transform_4(%arg0: i32) -> (i32, i32) {
    %c0_i32 = arith.constant 0 : i32
    %c0_i32_0 = arith.constant 0 : i32
    %c0_i32_1 = arith.constant 0 : i32
    return %c0_i32, %c0_i32_0 : i32, i32
  }
  func.func @transform_5(%arg0: i32) -> (i32, i32) {
    %c0_i32 = arith.constant 0 : i32
    %c0_i32_0 = arith.constant 0 : i32
    %c0_i32_1 = arith.constant 0 : i32
    return %c0_i32, %c0_i32_0 : i32, i32
  }
  func.func @transform_6(%arg0: i32) -> (i32, i32) {
    %c0_i32 = arith.constant 0 : i32
    %c0_i32_0 = arith.constant 0 : i32
    %c0_i32_1 = arith.constant 0 : i32
    return %c0_i32, %c0_i32_0 : i32, i32
  }
  func.func @transform_7(%arg0: i32) -> (i32, i32) {
    %c0_i32 = arith.constant 0 : i32
    %c0_i32_0 = arith.constant 0 : i32
    %c0_i32_1 = arith.constant 0 : i32
    return %c0_i32, %c0_i32_0 : i32, i32
  }
  func.func @transform_8(%arg0: i32) -> (i32, i32) {
    %c0_i32 = arith.constant 0 : i32
    %c0_i32_0 = arith.constant 0 : i32
    %c0_i32_1 = arith.constant 0 : i32
    return %c0_i32, %c0_i32_0 : i32, i32
  }
  func.func @transform_9(%arg0: i32) -> (i32, i32) {
    %c0_i32 = arith.constant 0 : i32
    %c0_i32_0 = arith.constant 0 : i32
    %c0_i32_1 = arith.constant 0 : i32
    return %c0_i32, %c0_i32_0 : i32, i32
  }
  func.func @transform_10(%arg0: i32) -> (i32, i32) {
    %c0_i32 = arith.constant 0 : i32
    %c0_i32_0 = arith.constant 0 : i32
    %c0_i32_1 = arith.constant 0 : i32
    return %c0_i32, %c0_i32_0 : i32, i32
  }
  func.func @transform_11(%arg0: i32) -> (i32, i32) {
    %c0_i32 = arith.constant 0 : i32
    %c0_i32_0 = arith.constant 0 : i32
    return %arg0, %c0_i32 : i32, i32
  }
}

</mosaic_0001>

<llo_original>
// kernel: tpu_custom_call.1
$region0: #{tpu_custom_call.1}
  #allocation0 [shape = 'u32[]', space=smem, size = 0x4, offset = 0x4, fixed_abs, tag = 'smem constant byte address 0x4 - core index']
  #allocation1 [shape = 'u32[144,128]{1,0:T(1,128)}', space=vmem, size = 0x12000, scoped, tag = 'internal scratch']
  %s0 = inlined_call_operand.vmem [shape: f32[16,512], index: 0, kind: input, shape index: {}]
  %s1 = inlined_call_operand.vmem [shape: f32[16,512], index: 1, kind: input, shape index: {}]
  %s2 = inlined_call_operand.hbm [shape: f32[512,256], index: 2, kind: input, shape index: {}]
  %s3 = inlined_call_operand.vmem [shape: f32[1,256], index: 3, kind: input, shape index: {}]
  %s4 = inlined_call_operand.hbm [shape: f32[256,512], index: 4, kind: input, shape index: {}]
  %s5 = inlined_call_operand.vmem [shape: f32[1,512], index: 5, kind: input, shape index: {}]
  %s6 = inlined_call_operand.hbm [shape: f32[512,512], index: 6, kind: input, shape index: {}]
  %s7 = inlined_call_operand.vmem [shape: f32[1,512], index: 7, kind: input, shape index: {}]
  %s8 = inlined_call_operand.hbm [shape: f32[512,256], index: 8, kind: input, shape index: {}]
  %s9 = inlined_call_operand.vmem [shape: f32[1,256], index: 9, kind: input, shape index: {}]
  %s10 = inlined_call_operand.vmem [shape: f32[256,2], index: 10, kind: input, shape index: {}]
  %s11 = inlined_call_operand.vmem [shape: f32[16,2], index: 11, kind: output, shape index: {}]
  %s12 = sld [smem:[#allocation0]]
  $region70: #{tpu_custom_call.1} parent=0
    _
  %s14 = ssub.s32 1, %s12
  %s15 = scalar_select 0, %s14, %s12
  $region1: #{tpu_custom_call.1} parent=0
    #allocation2 [shape = 'u8[524288]{0}', space=vmem, size = 0x80000, scoped, tag = 'input window, operand 2, single buffered']
    #allocation3 [shape = 's32[1]{0}', space=sflag, size = 0x4, scoped, tag = 'scoped memory for tpu_custom_call.1']
    #allocation4 [shape = 'u8[524288]{0}', space=vmem, size = 0x80000, scoped, tag = 'input window, operand 4, single buffered']
    #allocation5 [shape = 's32[1]{0}', space=sflag, size = 0x4, scoped, tag = 'scoped memory for tpu_custom_call.1']
    #allocation6 [shape = 'u8[1048576]{0}', space=vmem, size = 0x100000, scoped, tag = 'input window, operand 6, single buffered']
    #allocation7 [shape = 'u8[524288]{0}', space=vmem, size = 0x80000, scoped, tag = 'input window, operand 8, single buffered']
    #allocation8 [shape = 's32[1]{0}', space=sflag, size = 0x4, scoped, tag = 'scoped memory for tpu_custom_call.1']
    %16 = vsyncpa [#allocation3], 0
    %17 = vsyncpa [#allocation5], 0
    %18 = vsyncpa [#allocation8], 0
    // Predicated region
    $region2: #{tpu_custom_call.1} parent=1 // pred_check
      _
    $region3: #{tpu_custom_call.1} parent=1 // pred_check_branch
      %20 = sbr.rel (0) target = $region5
    $region4: #{tpu_custom_call.1} parent=1 // pred_region
      _
    $region5: #{tpu_custom_call.1} parent=1 // pred_fallthru
      _
    // Predicated region
    $region6: #{tpu_custom_call.1} parent=1 // pred_check
      _
    $region7: #{tpu_custom_call.1} parent=1 // pred_check_branch
      %22 = sbr.rel (0) target = $region9
    $region8: #{tpu_custom_call.1} parent=1 // pred_region
      _
    $region9: #{tpu_custom_call.1} parent=1 // pred_fallthru
      _
    // Predicated region
    $region10: #{tpu_custom_call.1} parent=1 // pred_check
      _
    $region11: #{tpu_custom_call.1} parent=1 // pred_check_branch
      %24 = sbr.rel (0) target = $region13
    $region12: #{tpu_custom_call.1} parent=1 // pred_region
      %s26 = ssub.s32 16384, 16384
      %27 = vsyncadd [#allocation3], %s26
      %s28 = sshll.u32 [#allocation2], 4
      %s29 = int_to_ptr.vmem [resolvable:$true] %s28
      %34 = dma.hbm_to_vmem [thread:$0]  %s2, 16384, %s29, [#allocation3], 256, 256, 16
    $region13: #{tpu_custom_call.1} parent=1 // pred_fallthru
      _
    // Predicated region
    $region14: #{tpu_custom_call.1} parent=1 // pred_check
      _
    $region15: #{tpu_custom_call.1} parent=1 // pred_check_branch
      %36 = sbr.rel (0) target = $region17
    $region16: #{tpu_custom_call.1} parent=1 // pred_region
      _
    $region17: #{tpu_custom_call.1} parent=1 // pred_fallthru
      _
    // Predicated region
    $region18: #{tpu_custom_call.1} parent=1 // pred_check
      _
    $region19: #{tpu_custom_call.1} parent=1 // pred_check_branch
      %38 = sbr.rel (0) target = $region21
    $region20: #{tpu_custom_call.1} parent=1 // pred_region
      %s40 = ssub.s32 16384, 16384
      %41 = vsyncadd [#allocation5], %s40
      %s42 = sshll.u32 [#allocation4], 4
      %s43 = int_to_ptr.vmem [resolvable:$true] %s42
      %48 = dma.hbm_to_vmem [thread:$0]  %s4, 16384, %s43, [#allocation5], 512, 512, 32
    $region21: #{tpu_custom_call.1} parent=1 // pred_fallthru
      _
    // Predicated region
    $region22: #{tpu_custom_call.1} parent=1 // pred_check
      _
    $region23: #{tpu_custom_call.1} parent=1 // pred_check_branch
      %50 = sbr.rel (0) target = $region25
    $region24: #{tpu_custom_call.1} parent=1 // pred_region
      _
    $region25: #{tpu_custom_call.1} parent=1 // pred_fallthru
      _
    // Predicated region
    $region26: #{tpu_custom_call.1} parent=1 // pred_check
      _
    $region27: #{tpu_custom_call.1} parent=1 // pred_check_branch
      %52 = sbr.rel (0) target = $region29
    $region28: #{tpu_custom_call.1} parent=1 // pred_region
      %s54 = ssub.s32 32768, 32768
      %55 = vsyncadd [#allocation5], %s54
      %s56 = sshll.u32 [#allocation6], 4
      %s57 = int_to_ptr.vmem [resolvable:$true] %s56
      %62 = dma.hbm_to_vmem [thread:$0]  %s6, 32768, %s57, [#allocation5], 512, 512, 32
    $region29: #{tpu_custom_call.1} parent=1 // pred_fallthru
      _
    // Predicated region
    $region30: #{tpu_custom_call.1} parent=1 // pred_check
      _
    $region31: #{tpu_custom_call.1} parent=1 // pred_check_branch
      %64 = sbr.rel (0) target = $region33
    $region32: #{tpu_custom_call.1} parent=1 // pred_region
      _
    $region33: #{tpu_custom_call.1} parent=1 // pred_fallthru
      _
    // Predicated region
    $region34: #{tpu_custom_call.1} parent=1 // pred_check
      _
    $region35: #{tpu_custom_call.1} parent=1 // pred_check_branch
      %66 = sbr.rel (0) target = $region37
    $region36: #{tpu_custom_call.1} parent=1 // pred_region
      %s68 = ssub.s32 16384, 16384
      %69 = vsyncadd [#allocation8], %s68
      %s70 = sshll.u32 [#allocation7], 4
      %s71 = int_to_ptr.vmem [resolvable:$true] %s70
      %76 = dma.hbm_to_vmem [thread:$0]  %s8, 16384, %s71, [#allocation8], 256, 256, 16
    $region37: #{tpu_custom_call.1} parent=1 // pred_fallthru
      _
    // Predicated region
    $region38: #{tpu_custom_call.1} parent=1 // pred_check
      _
    $region39: #{tpu_custom_call.1} parent=1 // pred_check_branch
      %78 = sbr.rel (0) target = $region41
    $region40: #{tpu_custom_call.1} parent=1 // pred_region
      _
    $region41: #{tpu_custom_call.1} parent=1 // pred_fallthru
      _
    // Predicated region
    $region42: #{tpu_custom_call.1} parent=1 // pred_check
      _
    $region43: #{tpu_custom_call.1} parent=1 // pred_check_branch
      %80 = sbr.rel (0) target = $region45
    $region44: #{tpu_custom_call.1} parent=1 // pred_region
      _
    $region45: #{tpu_custom_call.1} parent=1 // pred_fallthru
      _
    // Predicated region
    $region46: #{tpu_custom_call.1} parent=1 // pred_check
      _
    $region47: #{tpu_custom_call.1} parent=1 // pred_check_branch
      %82 = sbr.rel (0) target = $region49
    $region48: #{tpu_custom_call.1} parent=1 // pred_region
      %83 = dma.done [#allocation3], 16384
    $region49: #{tpu_custom_call.1} parent=1 // pred_fallthru
      _
    // Predicated region
    $region50: #{tpu_custom_call.1} parent=1 // pred_check
      _
    $region51: #{tpu_custom_call.1} parent=1 // pred_check_branch
      %85 = sbr.rel (0) target = $region53
    $region52: #{tpu_custom_call.1} parent=1 // pred_region
      %86 = dma.done [#allocation5], 16384
    $region53: #{tpu_custom_call.1} parent=1 // pred_fallthru
      _
    // Predicated region
    $region54: #{tpu_custom_call.1} parent=1 // pred_check
      _
    $region55: #{tpu_custom_call.1} parent=1 // pred_check_branch
      %88 = sbr.rel (0) target = $region57
    $region56: #{tpu_custom_call.1} parent=1 // pred_region
      %89 = dma.done [#allocation5], 32768
    $region57: #{tpu_custom_call.1} parent=1 // pred_fallthru
      _
    // Predicated region
    $region58: #{tpu_custom_call.1} parent=1 // pred_check
      _
    $region59: #{tpu_custom_call.1} parent=1 // pred_check_branch
      %91 = sbr.rel (0) target = $region61
    $region60: #{tpu_custom_call.1} parent=1 // pred_region
      %92 = dma.done [#allocation8], 16384
    $region61: #{tpu_custom_call.1} parent=1 // pred_fallthru
      _
    %v93 = vld [vmem:[%s0] sm:$0xff]
    %v94 = vld [vmem:[%s0 + $0x8] sm:$0xff]
    %v95 = vld [vmem:[%s0 + $0x10] sm:$0xff]
    %v96 = vld [vmem:[%s0 + $0x18] sm:$0xff]
    %v97 = vld [vmem:[%s0 + $0x20] sm:$0xff]
    %v98 = vld [vmem:[%s0 + $0x28] sm:$0xff]
    %v99 = vld [vmem:[%s0 + $0x30] sm:$0xff]
    %v100 = vld [vmem:[%s0 + $0x38] sm:$0xff]
    %v101 = vld [vmem:[#allocation2] sm:$0xff]
    %v102 = vld [vmem:[#allocation2 + $0x8] sm:$0xff]
    %v103 = vld [vmem:[#allocation2 + $0x10] sm:$0xff]
    %v104 = vld [vmem:[#allocation2 + $0x18] sm:$0xff]
    %v105 = vld [vmem:[#allocation2 + $0x20] sm:$0xff]
    %v106 = vld [vmem:[#allocation2 + $0x28] sm:$0xff]
    %v107 = vld [vmem:[#allocation2 + $0x30] sm:$0xff]
    %v108 = vld [vmem:[#allocation2 + $0x38] sm:$0xff]
    %v109 = vld [vmem:[#allocation2 + $0x40] sm:$0xff]
    %v110 = vld [vmem:[#allocation2 + $0x48] sm:$0xff]
    %v111 = vld [vmem:[#allocation2 + $0x50] sm:$0xff]
    %v112 = vld [vmem:[#allocation2 + $0x58] sm:$0xff]
    %v113 = vld [vmem:[#allocation2 + $0x60] sm:$0xff]
    %v114 = vld [vmem:[#allocation2 + $0x68] sm:$0xff]
    %v115 = vld [vmem:[#allocation2 + $0x70] sm:$0xff]
    %v116 = vld [vmem:[#allocation2 + $0x78] sm:$0xff]
    %v117 = vld [vmem:[#allocation2 + $0x80] sm:$0xff]
    %v118 = vld [vmem:[#allocation2 + $0x88] sm:$0xff]
    %v119 = vld [vmem:[#allocation2 + $0x90] sm:$0xff]
    %v120 = vld [vmem:[#allocation2 + $0x98] sm:$0xff]
    %v121 = vld [vmem:[#allocation2 + $0xa0] sm:$0xff]
    %v122 = vld [vmem:[#allocation2 + $0xa8] sm:$0xff]
    %v123 = vld [vmem:[#allocation2 + $0xb0] sm:$0xff]
    %v124 = vld [vmem:[#allocation2 + $0xb8] sm:$0xff]
    %v125 = vld [vmem:[#allocation2 + $0xc0] sm:$0xff]
    %v126 = vld [vmem:[#allocation2 + $0xc8] sm:$0xff]
    %v127 = vld [vmem:[#allocation2 + $0xd0] sm:$0xff]
    %v128 = vld [vmem:[#allocation2 + $0xd8] sm:$0xff]
    %v129 = vld [vmem:[#allocation2 + $0xe0] sm:$0xff]
    %v130 = vld [vmem:[#allocation2 + $0xe8] sm:$0xff]
    %v131 = vld [vmem:[#allocation2 + $0xf0] sm:$0xff]
    %v132 = vld [vmem:[#allocation2 + $0xf8] sm:$0xff]
    %v133 = vld [vmem:[#allocation2 + $0x100] sm:$0xff]
    %v134 = vld [vmem:[#allocation2 + $0x108] sm:$0xff]
    %v135 = vld [vmem:[#allocation2 + $0x110] sm:$0xff]
    %v136 = vld [vmem:[#allocation2 + $0x118] sm:$0xff]
    %v137 = vld [vmem:[#allocation2 + $0x120] sm:$0xff]
    %v138 = vld [vmem:[#allocation2 + $0x128] sm:$0xff]
    %v139 = vld [vmem:[#allocation2 + $0x130] sm:$0xff]
    %v140 = vld [vmem:[#allocation2 + $0x138] sm:$0xff]
    %v141 = vld [vmem:[#allocation2 + $0x140] sm:$0xff]
    %v142 = vld [vmem:[#allocation2 + $0x148] sm:$0xff]
    %v143 = vld [vmem:[#allocation2 + $0x150] sm:$0xff]
    %v144 = vld [vmem:[#allocation2 + $0x158] sm:$0xff]
    %v145 = vld [vmem:[#allocation2 + $0x160] sm:$0xff]
    %v146 = vld [vmem:[#allocation2 + $0x168] sm:$0xff]
    %v147 = vld [vmem:[#allocation2 + $0x170] sm:$0xff]
    %v148 = vld [vmem:[#allocation2 + $0x178] sm:$0xff]
    %v149 = vld [vmem:[#allocation2 + $0x180] sm:$0xff]
    %v150 = vld [vmem:[#allocation2 + $0x188] sm:$0xff]
    %v151 = vld [vmem:[#allocation2 + $0x190] sm:$0xff]
    %v152 = vld [vmem:[#allocation2 + $0x198] sm:$0xff]
    %v153 = vld [vmem:[#allocation2 + $0x1a0] sm:$0xff]
    %v154 = vld [vmem:[#allocation2 + $0x1a8] sm:$0xff]
    %v155 = vld [vmem:[#allocation2 + $0x1b0] sm:$0xff]
    %v156 = vld [vmem:[#allocation2 + $0x1b8] sm:$0xff]
    %v157 = vld [vmem:[#allocation2 + $0x1c0] sm:$0xff]
    %v158 = vld [vmem:[#allocation2 + $0x1c8] sm:$0xff]
    %v159 = vld [vmem:[#allocation2 + $0x1d0] sm:$0xff]
    %v160 = vld [vmem:[#allocation2 + $0x1d8] sm:$0xff]
    %v161 = vld [vmem:[#allocation2 + $0x1e0] sm:$0xff]
    %v162 = vld [vmem:[#allocation2 + $0x1e8] sm:$0xff]
    %v163 = vld [vmem:[#allocation2 + $0x1f0] sm:$0xff]
    %v164 = vld [vmem:[#allocation2 + $0x1f8] sm:$0xff]
    %v165 = vld [vmem:[#allocation2 + $0x200] sm:$0xff]
    %v166 = vld [vmem:[#allocation2 + $0x208] sm:$0xff]
    %v167 = vld [vmem:[#allocation2 + $0x210] sm:$0xff]
    %v168 = vld [vmem:[#allocation2 + $0x218] sm:$0xff]
    %v169 = vld [vmem:[#allocation2 + $0x220] sm:$0xff]
    %v170 = vld [vmem:[#allocation2 + $0x228] sm:$0xff]
    %v171 = vld [vmem:[#allocation2 + $0x230] sm:$0xff]
    %v172 = vld [vmem:[#allocation2 + $0x238] sm:$0xff]
    %v173 = vld [vmem:[#allocation2 + $0x240] sm:$0xff]
    %v174 = vld [vmem:[#allocation2 + $0x248] sm:$0xff]
    %v175 = vld [vmem:[#allocation2 + $0x250] sm:$0xff]
    %v176 = vld [vmem:[#allocation2 + $0x258] sm:$0xff]
    %v177 = vld [vmem:[#allocation2 + $0x260] sm:$0xff]
    %v178 = vld [vmem:[#allocation2 + $0x268] sm:$0xff]
    %v179 = vld [vmem:[#allocation2 + $0x270] sm:$0xff]
    %v180 = vld [vmem:[#allocation2 + $0x278] sm:$0xff]
    %v181 = vld [vmem:[#allocation2 + $0x280] sm:$0xff]
    %v182 = vld [vmem:[#allocation2 + $0x288] sm:$0xff]
    %v183 = vld [vmem:[#allocation2 + $0x290] sm:$0xff]
    %v184 = vld [vmem:[#allocation2 + $0x298] sm:$0xff]
    %v185 = vld [vmem:[#allocation2 + $0x2a0] sm:$0xff]
    %v186 = vld [vmem:[#allocation2 + $0x2a8] sm:$0xff]
    %v187 = vld [vmem:[#allocation2 + $0x2b0] sm:$0xff]
    %v188 = vld [vmem:[#allocation2 + $0x2b8] sm:$0xff]
    %v189 = vld [vmem:[#allocation2 + $0x2c0] sm:$0xff]
    %v190 = vld [vmem:[#allocation2 + $0x2c8] sm:$0xff]
    %v191 = vld [vmem:[#allocation2 + $0x2d0] sm:$0xff]
    %v192 = vld [vmem:[#allocation2 + $0x2d8] sm:$0xff]
    %v193 = vld [vmem:[#allocation2 + $0x2e0] sm:$0xff]
    %v194 = vld [vmem:[#allocation2 + $0x2e8] sm:$0xff]
    %v195 = vld [vmem:[#allocation2 + $0x2f0] sm:$0xff]
    %v196 = vld [vmem:[#allocation2 + $0x2f8] sm:$0xff]
    %v197 = vld [vmem:[#allocation2 + $0x300] sm:$0xff]
    %v198 = vld [vmem:[#allocation2 + $0x308] sm:$0xff]
    %v199 = vld [vmem:[#allocation2 + $0x310] sm:$0xff]
    %v200 = vld [vmem:[#allocation2 + $0x318] sm:$0xff]
    %v201 = vld [vmem:[#allocation2 + $0x320] sm:$0xff]
    %v202 = vld [vmem:[#allocation2 + $0x328] sm:$0xff]
    %v203 = vld [vmem:[#allocation2 + $0x330] sm:$0xff]
    %v204 = vld [vmem:[#allocation2 + $0x338] sm:$0xff]
    %v205 = vld [vmem:[#allocation2 + $0x340] sm:$0xff]
    %v206 = vld [vmem:[#allocation2 + $0x348] sm:$0xff]
    %v207 = vld [vmem:[#allocation2 + $0x350] sm:$0xff]
    %v208 = vld [vmem:[#allocation2 + $0x358] sm:$0xff]
    %v209 = vld [vmem:[#allocation2 + $0x360] sm:$0xff]
    %v210 = vld [vmem:[#allocation2 + $0x368] sm:$0xff]
    %v211 = vld [vmem:[#allocation2 + $0x370] sm:$0xff]
    %v212 = vld [vmem:[#allocation2 + $0x378] sm:$0xff]
    %v213 = vld [vmem:[#allocation2 + $0x380] sm:$0xff]
    %v214 = vld [vmem:[#allocation2 + $0x388] sm:$0xff]
    %v215 = vld [vmem:[#allocation2 + $0x390] sm:$0xff]
    %v216 = vld [vmem:[#allocation2 + $0x398] sm:$0xff]
    %v217 = vld [vmem:[#allocation2 + $0x3a0] sm:$0xff]
    %v218 = vld [vmem:[#allocation2 + $0x3a8] sm:$0xff]
    %v219 = vld [vmem:[#allocation2 + $0x3b0] sm:$0xff]
    %v220 = vld [vmem:[#allocation2 + $0x3b8] sm:$0xff]
    %v221 = vld [vmem:[#allocation2 + $0x3c0] sm:$0xff]
    %v222 = vld [vmem:[#allocation2 + $0x3c8] sm:$0xff]
    %v223 = vld [vmem:[#allocation2 + $0x3d0] sm:$0xff]
    %v224 = vld [vmem:[#allocation2 + $0x3d8] sm:$0xff]
    %v225 = vld [vmem:[#allocation2 + $0x3e0] sm:$0xff]
    %v226 = vld [vmem:[#allocation2 + $0x3e8] sm:$0xff]
    %v227 = vld [vmem:[#allocation2 + $0x3f0] sm:$0xff]
    %v228 = vld [vmem:[#allocation2 + $0x3f8] sm:$0xff]
    %v229 = vld [vmem:[%s3] sm:$0x3]
    %v231 = vlaneseq
    %v232 = vshrl.u32 %v231, 7
    %v233 = vsub.s32 0, %v232
    %v234 = vrot.slane %v229, %v233
    %v235 = vlaneseq
    %v236 = vshrl.u32 %v235, 7
    %v237 = vsub.s32 1, %v236
    %v238 = vrot.slane %v229, %v237
    %241 = vmatprep.subr.mxu0 %v132
    %242 = vmatpush1.msra.mxu0 %v131
    %243 = vmatprep.subr.mxu0 %v130
    %244 = vmatpush1.msra.mxu0 %v129
    %245 = vmatprep.subr.mxu0 %v128
    %246 = vmatpush1.msra.mxu0 %v127
    %247 = vmatprep.subr.mxu0 %v126
    %248 = vmatpush1.msra.mxu0 %v125
    %249 = vmatprep.subr.mxu0 %v124
    %250 = vmatpush1.msra.mxu0 %v123
    %251 = vmatprep.subr.mxu0 %v122
    %252 = vmatpush1.msra.mxu0 %v121
    %253 = vmatprep.subr.mxu0 %v120
    %254 = vmatpush1.msra.mxu0 %v119
    %255 = vmatprep.subr.mxu0 %v118
    %256 = vmatpush1.msra.mxu0 %v117
    %257 = vmatprep.subr.mxu0 %v116
    %258 = vmatpush1.msra.mxu0 %v115
    %259 = vmatprep.subr.mxu0 %v114
    %260 = vmatpush1.msra.mxu0 %v113
    %261 = vmatprep.subr.mxu0 %v112
    %262 = vmatpush1.msra.mxu0 %v111
    %263 = vmatprep.subr.mxu0 %v110
    %264 = vmatpush1.msra.mxu0 %v109
    %265 = vmatprep.subr.mxu0 %v108
    %266 = vmatpush1.msra.mxu0 %v107
    %267 = vmatprep.subr.mxu0 %v106
    %268 = vmatpush1.msra.mxu0 %v105
    %269 = vmatprep.subr.mxu0 %v104
    %270 = vmatpush1.msra.mxu0 %v103
    %271 = vmatprep.subr.mxu0 %v102
    %272 = vmatpush1.msra.mxu0 %v101
    %273 = vmatprep.subr.mxu0 %v164
    %274 = vmatpush2.msra.mxu0 %v163
    %275 = vmatprep.subr.mxu0 %v162
    %276 = vmatpush2.msra.mxu0 %v161
    %277 = vmatprep.subr.mxu0 %v160
    %278 = vmatpush2.msra.mxu0 %v159
    %279 = vmatprep.subr.mxu0 %v158
    %280 = vmatpush2.msra.mxu0 %v157
    %281 = vmatprep.subr.mxu0 %v156
    %282 = vmatpush2.msra.mxu0 %v155
    %283 = vmatprep.subr.mxu0 %v154
    %284 = vmatpush2.msra.mxu0 %v153
    %285 = vmatprep.subr.mxu0 %v152
    %286 = vmatpush2.msra.mxu0 %v151
    %287 = vmatprep.subr.mxu0 %v150
    %288 = vmatpush2.msra.mxu0 %v149
    %289 = vmatprep.subr.mxu0 %v148
    %290 = vmatpush2.msra.mxu0 %v147
    %291 = vmatprep.subr.mxu0 %v146
    %292 = vmatpush2.msra.mxu0 %v145
    %293 = vmatprep.subr.mxu0 %v144
    %294 = vmatpush2.msra.mxu0 %v143
    %295 = vmatprep.subr.mxu0 %v142
    %296 = vmatpush2.msra.mxu0 %v141
    %297 = vmatprep.subr.mxu0 %v140
    %298 = vmatpush2.msra.mxu0 %v139
    %299 = vmatprep.subr.mxu0 %v138
    %300 = vmatpush2.msra.mxu0 %v137
    %301 = vmatprep.subr.mxu0 %v136
    %302 = vmatpush2.msra.mxu0 %v135
    %303 = vmatprep.subr.mxu0 %v134
    %304 = vmatpush2.msra.mxu0 %v133
    %305 = vmatprep.mubr.f32.mxu0 %v94
    %306 = vmatmul.mubr.f32.gmra.mxu0 %v93
    %v307 = vpop.f32.mrf.mxu0
    %v308 = vadd.f32 %v234, %v307
    %v309 = vpop.f32.mrf.mxu0
    %v310 = vadd.f32 %v238, %v309
    %311 = vmatprep.mubr.f32.mxu0 %v98
    %312 = vmatmul.mubr.f32.gmra.mxu0 %v97
    %v313 = vpop.f32.mrf.mxu0
    %v314 = vadd.f32 %v234, %v313
    %v315 = vpop.f32.mrf.mxu0
    %v316 = vadd.f32 %v238, %v315
    %317 = vdwg.mxu0
    %318 = vmatprep.subr.mxu0 %v196
    %319 = vmatpush1.msra.mxu0 %v195
    %320 = vmatprep.subr.mxu0 %v194
    %321 = vmatpush1.msra.mxu0 %v193
    %322 = vmatprep.subr.mxu0 %v192
    %323 = vmatpush1.msra.mxu0 %v191
    %324 = vmatprep.subr.mxu0 %v190
    %325 = vmatpush1.msra.mxu0 %v189
    %326 = vmatprep.subr.mxu0 %v188
    %327 = vmatpush1.msra.mxu0 %v187
    %328 = vmatprep.subr.mxu0 %v186
    %329 = vmatpush1.msra.mxu0 %v185
    %330 = vmatprep.subr.mxu0 %v184
    %331 = vmatpush1.msra.mxu0 %v183
    %332 = vmatprep.subr.mxu0 %v182
    %333 = vmatpush1.msra.mxu0 %v181
    %334 = vmatprep.subr.mxu0 %v180
    %335 = vmatpush1.msra.mxu0 %v179
    %336 = vmatprep.subr.mxu0 %v178
    %337 = vmatpush1.msra.mxu0 %v177
    %338 = vmatprep.subr.mxu0 %v176
    %339 = vmatpush1.msra.mxu0 %v175
    %340 = vmatprep.subr.mxu0 %v174
    %341 = vmatpush1.msra.mxu0 %v173
    %342 = vmatprep.subr.mxu0 %v172
    %343 = vmatpush1.msra.mxu0 %v171
    %344 = vmatprep.subr.mxu0 %v170
    %345 = vmatpush1.msra.mxu0 %v169
    %346 = vmatprep.subr.mxu0 %v168
    %347 = vmatpush1.msra.mxu0 %v167
    %348 = vmatprep.subr.mxu0 %v166
    %349 = vmatpush1.msra.mxu0 %v165
    %350 = vmatprep.subr.mxu0 %v228
    %351 = vmatpush2.msra.mxu0 %v227
    %352 = vmatprep.subr.mxu0 %v226
    %353 = vmatpush2.msra.mxu0 %v225
    %354 = vmatprep.subr.mxu0 %v224
    %355 = vmatpush2.msra.mxu0 %v223
    %356 = vmatprep.subr.mxu0 %v222
    %357 = vmatpush2.msra.mxu0 %v221
    %358 = vmatprep.subr.mxu0 %v220
    %359 = vmatpush2.msra.mxu0 %v219
    %360 = vmatprep.subr.mxu0 %v218
    %361 = vmatpush2.msra.mxu0 %v217
    %362 = vmatprep.subr.mxu0 %v216
    %363 = vmatpush2.msra.mxu0 %v215
    %364 = vmatprep.subr.mxu0 %v214
    %365 = vmatpush2.msra.mxu0 %v213
    %366 = vmatprep.subr.mxu0 %v212
    %367 = vmatpush2.msra.mxu0 %v211
    %368 = vmatprep.subr.mxu0 %v210
    %369 = vmatpush2.msra.mxu0 %v209
    %370 = vmatprep.subr.mxu0 %v208
    %371 = vmatpush2.msra.mxu0 %v207
    %372 = vmatprep.subr.mxu0 %v206
    %373 = vmatpush2.msra.mxu0 %v205
    %374 = vmatprep.subr.mxu0 %v204
    %375 = vmatpush2.msra.mxu0 %v203
    %376 = vmatprep.subr.mxu0 %v202
    %377 = vmatpush2.msra.mxu0 %v201
    %378 = vmatprep.subr.mxu0 %v200
    %379 = vmatpush2.msra.mxu0 %v199
    %380 = vmatprep.subr.mxu0 %v198
    %381 = vmatpush2.msra.mxu0 %v197
    %382 = vmatprep.mubr.f32.mxu0 %v96
    %383 = vmatmul.mubr.f32.gmra.mxu0 %v95
    %v384 = vpop.f32.mrf.mxu0
    %v385 = vadd.f32 %v308, %v384
    %v386 = vpop.f32.mrf.mxu0
    %v387 = vadd.f32 %v310, %v386
    %388 = vmatprep.mubr.f32.mxu0 %v100
    %389 = vmatmul.mubr.f32.gmra.mxu0 %v99
    %v390 = vpop.f32.mrf.mxu0
    %v391 = vadd.f32 %v314, %v390
    %v392 = vpop.f32.mrf.mxu0
    %v393 = vadd.f32 %v316, %v392
    %394 = vdwg.mxu0
    %v395 = vmin.f32 %v385, 20.0
    %v396 = vmin.f32 %v387, 20.0
    %v397 = vmin.f32 %v391, 20.0
    %v398 = vmin.f32 %v393, 20.0
    %v399 = vmul.f32 %v395, 1.442695
    %v400 = vpow.pop %v399
    %v401 = vmul.f32 %v396, 1.442695
    %v402 = vpow.pop %v401
    %v403 = vmul.f32 %v397, 1.442695
    %v404 = vpow.pop %v403
    %v405 = vmul.f32 %v398, 1.442695
    %v406 = vpow.pop %v405
    %v407 = vadd.f32 %v400, 1.0
    %v408 = vadd.f32 %v402, 1.0
    %v409 = vadd.f32 %v404, 1.0
    %v410 = vadd.f32 %v406, 1.0
    %v411 = vmul.f32 %v407, %v407
    %v412 = vmul.f32 %v408, %v408
    %v413 = vmul.f32 %v409, %v409
    %v414 = vmul.f32 %v410, %v410
    %v415 = vsub.f32 %v411, 1.0
    %v416 = vsub.f32 %v412, 1.0
    %v417 = vsub.f32 %v413, 1.0
    %v418 = vsub.f32 %v414, 1.0
    %v419 = vadd.f32 %v411, 1.0
    %v420 = vadd.f32 %v412, 1.0
    %v421 = vadd.f32 %v413, 1.0
    %v422 = vadd.f32 %v414, 1.0
    %v423 = vrcp.pop %v419
    %v424 = vmul.f32 %v415, %v423
    %v425 = vrcp.pop %v420
    %v426 = vmul.f32 %v416, %v425
    %v427 = vrcp.pop %v421
    %v428 = vmul.f32 %v417, %v427
    %v429 = vrcp.pop %v422
    %v430 = vmul.f32 %v418, %v429
    %v431 = vmul.f32 %v385, %v424
    %v432 = vmul.f32 %v387, %v426
    %v433 = vmul.f32 %v391, %v428
    %v434 = vmul.f32 %v393, %v430
    %v435 = vld [vmem:[#allocation4] sm:$0xff]
    %v436 = vld [vmem:[#allocation4 + $0x8] sm:$0xff]
    %v437 = vld [vmem:[#allocation4 + $0x10] sm:$0xff]
    %v438 = vld [vmem:[#allocation4 + $0x18] sm:$0xff]
    %v439 = vld [vmem:[#allocation4 + $0x20] sm:$0xff]
    %v440 = vld [vmem:[#allocation4 + $0x28] sm:$0xff]
    %v441 = vld [vmem:[#allocation4 + $0x30] sm:$0xff]
    %v442 = vld [vmem:[#allocation4 + $0x38] sm:$0xff]
    %v443 = vld [vmem:[#allocation4 + $0x40] sm:$0xff]
    %v444 = vld [vmem:[#allocation4 + $0x48] sm:$0xff]
    %v445 = vld [vmem:[#allocation4 + $0x50] sm:$0xff]
    %v446 = vld [vmem:[#allocation4 + $0x58] sm:$0xff]
    %v447 = vld [vmem:[#allocation4 + $0x60] sm:$0xff]
    %v448 = vld [vmem:[#allocation4 + $0x68] sm:$0xff]
    %v449 = vld [vmem:[#allocation4 + $0x70] sm:$0xff]
    %v450 = vld [vmem:[#allocation4 + $0x78] sm:$0xff]
    %v451 = vld [vmem:[#allocation4 + $0x80] sm:$0xff]
    %v452 = vld [vmem:[#allocation4 + $0x88] sm:$0xff]
    %v453 = vld [vmem:[#allocation4 + $0x90] sm:$0xff]
    %v454 = vld [vmem:[#allocation4 + $0x98] sm:$0xff]
    %v455 = vld [vmem:[#allocation4 + $0xa0] sm:$0xff]
    %v456 = vld [vmem:[#allocation4 + $0xa8] sm:$0xff]
    %v457 = vld [vmem:[#allocation4 + $0xb0] sm:$0xff]
    %v458 = vld [vmem:[#allocation4 + $0xb8] sm:$0xff]
    %v459 = vld [vmem:[#allocation4 + $0xc0] sm:$0xff]
    %v460 = vld [vmem:[#allocation4 + $0xc8] sm:$0xff]
    %v461 = vld [vmem:[#allocation4 + $0xd0] sm:$0xff]
    %v462 = vld [vmem:[#allocation4 + $0xd8] sm:$0xff]
    %v463 = vld [vmem:[#allocation4 + $0xe0] sm:$0xff]
    %v464 = vld [vmem:[#allocation4 + $0xe8] sm:$0xff]
    %v465 = vld [vmem:[#allocation4 + $0xf0] sm:$0xff]
    %v466 = vld [vmem:[#allocation4 + $0xf8] sm:$0xff]
    %v467 = vld [vmem:[#allocation4 + $0x100] sm:$0xff]
    %v468 = vld [vmem:[#allocation4 + $0x108] sm:$0xff]
    %v469 = vld [vmem:[#allocation4 + $0x110] sm:$0xff]
    %v470 = vld [vmem:[#allocation4 + $0x118] sm:$0xff]
    %v471 = vld [vmem:[#allocation4 + $0x120] sm:$0xff]
    %v472 = vld [vmem:[#allocation4 + $0x128] sm:$0xff]
    %v473 = vld [vmem:[#allocation4 + $0x130] sm:$0xff]
    %v474 = vld [vmem:[#allocation4 + $0x138] sm:$0xff]
    %v475 = vld [vmem:[#allocation4 + $0x140] sm:$0xff]
    %v476 = vld [vmem:[#allocation4 + $0x148] sm:$0xff]
    %v477 = vld [vmem:[#allocation4 + $0x150] sm:$0xff]
    %v478 = vld [vmem:[#allocation4 + $0x158] sm:$0xff]
    %v479 = vld [vmem:[#allocation4 + $0x160] sm:$0xff]
    %v480 = vld [vmem:[#allocation4 + $0x168] sm:$0xff]
    %v481 = vld [vmem:[#allocation4 + $0x170] sm:$0xff]
    %v482 = vld [vmem:[#allocation4 + $0x178] sm:$0xff]
    %v483 = vld [vmem:[#allocation4 + $0x180] sm:$0xff]
    %v484 = vld [vmem:[#allocation4 + $0x188] sm:$0xff]
    %v485 = vld [vmem:[#allocation4 + $0x190] sm:$0xff]
    %v486 = vld [vmem:[#allocation4 + $0x198] sm:$0xff]
    %v487 = vld [vmem:[#allocation4 + $0x1a0] sm:$0xff]
    %v488 = vld [vmem:[#allocation4 + $0x1a8] sm:$0xff]
    %v489 = vld [vmem:[#allocation4 + $0x1b0] sm:$0xff]
    %v490 = vld [vmem:[#allocation4 + $0x1b8] sm:$0xff]
    %v491 = vld [vmem:[#allocation4 + $0x1c0] sm:$0xff]
    %v492 = vld [vmem:[#allocation4 + $0x1c8] sm:$0xff]
    %v493 = vld [vmem:[#allocation4 + $0x1d0] sm:$0xff]
    %v494 = vld [vmem:[#allocation4 + $0x1d8] sm:$0xff]
    %v495 = vld [vmem:[#allocation4 + $0x1e0] sm:$0xff]
    %v496 = vld [vmem:[#allocation4 + $0x1e8] sm:$0xff]
    %v497 = vld [vmem:[#allocation4 + $0x1f0] sm:$0xff]
    %v498 = vld [vmem:[#allocation4 + $0x1f8] sm:$0xff]
    %v499 = vld [vmem:[#allocation4 + $0x200] sm:$0xff]
    %v500 = vld [vmem:[#allocation4 + $0x208] sm:$0xff]
    %v501 = vld [vmem:[#allocation4 + $0x210] sm:$0xff]
    %v502 = vld [vmem:[#allocation4 + $0x218] sm:$0xff]
    %v503 = vld [vmem:[#allocation4 + $0x220] sm:$0xff]
    %v504 = vld [vmem:[#allocation4 + $0x228] sm:$0xff]
    %v505 = vld [vmem:[#allocation4 + $0x230] sm:$0xff]
    %v506 = vld [vmem:[#allocation4 + $0x238] sm:$0xff]
    %v507 = vld [vmem:[#allocation4 + $0x240] sm:$0xff]
    %v508 = vld [vmem:[#allocation4 + $0x248] sm:$0xff]
    %v509 = vld [vmem:[#allocation4 + $0x250] sm:$0xff]
    %v510 = vld [vmem:[#allocation4 + $0x258] sm:$0xff]
    %v511 = vld [vmem:[#allocation4 + $0x260] sm:$0xff]
    %v512 = vld [vmem:[#allocation4 + $0x268] sm:$0xff]
    %v513 = vld [vmem:[#allocation4 + $0x270] sm:$0xff]
    %v514 = vld [vmem:[#allocation4 + $0x278] sm:$0xff]
    %v515 = vld [vmem:[#allocation4 + $0x280] sm:$0xff]
    %v516 = vld [vmem:[#allocation4 + $0x288] sm:$0xff]
    %v517 = vld [vmem:[#allocation4 + $0x290] sm:$0xff]
    %v518 = vld [vmem:[#allocation4 + $0x298] sm:$0xff]
    %v519 = vld [vmem:[#allocation4 + $0x2a0] sm:$0xff]
    %v520 = vld [vmem:[#allocation4 + $0x2a8] sm:$0xff]
    %v521 = vld [vmem:[#allocation4 + $0x2b0] sm:$0xff]
    %v522 = vld [vmem:[#allocation4 + $0x2b8] sm:$0xff]
    %v523 = vld [vmem:[#allocation4 + $0x2c0] sm:$0xff]
    %v524 = vld [vmem:[#allocation4 + $0x2c8] sm:$0xff]
    %v525 = vld [vmem:[#allocation4 + $0x2d0] sm:$0xff]
    %v526 = vld [vmem:[#allocation4 + $0x2d8] sm:$0xff]
    %v527 = vld [vmem:[#allocation4 + $0x2e0] sm:$0xff]
    %v528 = vld [vmem:[#allocation4 + $0x2e8] sm:$0xff]
    %v529 = vld [vmem:[#allocation4 + $0x2f0] sm:$0xff]
    %v530 = vld [vmem:[#allocation4 + $0x2f8] sm:$0xff]
    %v531 = vld [vmem:[#allocation4 + $0x300] sm:$0xff]
    %v532 = vld [vmem:[#allocation4 + $0x308] sm:$0xff]
    %v533 = vld [vmem:[#allocation4 + $0x310] sm:$0xff]
    %v534 = vld [vmem:[#allocation4 + $0x318] sm:$0xff]
    %v535 = vld [vmem:[#allocation4 + $0x320] sm:$0xff]
    %v536 = vld [vmem:[#allocation4 + $0x328] sm:$0xff]
    %v537 = vld [vmem:[#allocation4 + $0x330] sm:$0xff]
    %v538 = vld [vmem:[#allocation4 + $0x338] sm:$0xff]
    %v539 = vld [vmem:[#allocation4 + $0x340] sm:$0xff]
    %v540 = vld [vmem:[#allocation4 + $0x348] sm:$0xff]
    %v541 = vld [vmem:[#allocation4 + $0x350] sm:$0xff]
    %v542 = vld [vmem:[#allocation4 + $0x358] sm:$0xff]
    %v543 = vld [vmem:[#allocation4 + $0x360] sm:$0xff]
    %v544 = vld [vmem:[#allocation4 + $0x368] sm:$0xff]
    %v545 = vld [vmem:[#allocation4 + $0x370] sm:$0xff]
    %v546 = vld [vmem:[#allocation4 + $0x378] sm:$0xff]
    %v547 = vld [vmem:[#allocation4 + $0x380] sm:$0xff]
    %v548 = vld [vmem:[#allocation4 + $0x388] sm:$0xff]
    %v549 = vld [vmem:[#allocation4 + $0x390] sm:$0xff]
    %v550 = vld [vmem:[#allocation4 + $0x398] sm:$0xff]
    %v551 = vld [vmem:[#allocation4 + $0x3a0] sm:$0xff]
    %v552 = vld [vmem:[#allocation4 + $0x3a8] sm:$0xff]
    %v553 = vld [vmem:[#allocation4 + $0x3b0] sm:$0xff]
    %v554 = vld [vmem:[#allocation4 + $0x3b8] sm:$0xff]
    %v555 = vld [vmem:[#allocation4 + $0x3c0] sm:$0xff]
    %v556 = vld [vmem:[#allocation4 + $0x3c8] sm:$0xff]
    %v557 = vld [vmem:[#allocation4 + $0x3d0] sm:$0xff]
    %v558 = vld [vmem:[#allocation4 + $0x3d8] sm:$0xff]
    %v559 = vld [vmem:[#allocation4 + $0x3e0] sm:$0xff]
    %v560 = vld [vmem:[#allocation4 + $0x3e8] sm:$0xff]
    %v561 = vld [vmem:[#allocation4 + $0x3f0] sm:$0xff]
    %v562 = vld [vmem:[#allocation4 + $0x3f8] sm:$0xff]
    %v563 = vld [vmem:[%s5] sm:$0xf]
    %v565 = vlaneseq
    %v566 = vshrl.u32 %v565, 7
    %v567 = vsub.s32 0, %v566
    %v568 = vrot.slane %v563, %v567
    %v569 = vlaneseq
    %v570 = vshrl.u32 %v569, 7
    %v571 = vsub.s32 1, %v570
    %v572 = vrot.slane %v563, %v571
    %v573 = vlaneseq
    %v574 = vshrl.u32 %v573, 7
    %v575 = vsub.s32 2, %v574
    %v576 = vrot.slane %v563, %v575
    %v577 = vlaneseq
    %v578 = vshrl.u32 %v577, 7
    %v579 = vsub.s32 3, %v578
    %v580 = vrot.slane %v563, %v579
    %585 = vmatprep.subr.mxu0 %v496
    %586 = vmatpush1.msra.mxu0 %v495
    %587 = vmatprep.subr.mxu0 %v492
    %588 = vmatpush1.msra.mxu0 %v491
    %589 = vmatprep.subr.mxu0 %v488
    %590 = vmatpush1.msra.mxu0 %v487
    %591 = vmatprep.subr.mxu0 %v484
    %592 = vmatpush1.msra.mxu0 %v483
    %593 = vmatprep.subr.mxu0 %v480
    %594 = vmatpush1.msra.mxu0 %v479
    %595 = vmatprep.subr.mxu0 %v476
    %596 = vmatpush1.msra.mxu0 %v475
    %597 = vmatprep.subr.mxu0 %v472
    %598 = vmatpush1.msra.mxu0 %v471
    %599 = vmatprep.subr.mxu0 %v468
    %600 = vmatpush1.msra.mxu0 %v467
    %601 = vmatprep.subr.mxu0 %v464
    %602 = vmatpush1.msra.mxu0 %v463
    %603 = vmatprep.subr.mxu0 %v460
    %604 = vmatpush1.msra.mxu0 %v459
    %605 = vmatprep.subr.mxu0 %v456
    %606 = vmatpush1.msra.mxu0 %v455
    %607 = vmatprep.subr.mxu0 %v452
    %608 = vmatpush1.msra.mxu0 %v451
    %609 = vmatprep.subr.mxu0 %v448
    %610 = vmatpush1.msra.mxu0 %v447
    %611 = vmatprep.subr.mxu0 %v444
    %612 = vmatpush1.msra.mxu0 %v443
    %613 = vmatprep.subr.mxu0 %v440
    %614 = vmatpush1.msra.mxu0 %v439
    %615 = vmatprep.subr.mxu0 %v436
    %616 = vmatpush1.msra.mxu0 %v435
    %617 = vmatprep.subr.mxu0 %v560
    %618 = vmatpush2.msra.mxu0 %v559
    %619 = vmatprep.subr.mxu0 %v556
    %620 = vmatpush2.msra.mxu0 %v555
    %621 = vmatprep.subr.mxu0 %v552
    %622 = vmatpush2.msra.mxu0 %v551
    %623 = vmatprep.subr.mxu0 %v548
    %624 = vmatpush2.msra.mxu0 %v547
    %625 = vmatprep.subr.mxu0 %v544
    %626 = vmatpush2.msra.mxu0 %v543
    %627 = vmatprep.subr.mxu0 %v540
    %628 = vmatpush2.msra.mxu0 %v539
    %629 = vmatprep.subr.mxu0 %v536
    %630 = vmatpush2.msra.mxu0 %v535
    %631 = vmatprep.subr.mxu0 %v532
    %632 = vmatpush2.msra.mxu0 %v531
    %633 = vmatprep.subr.mxu0 %v528
    %634 = vmatpush2.msra.mxu0 %v527
    %635 = vmatprep.subr.mxu0 %v524
    %636 = vmatpush2.msra.mxu0 %v523
    %637 = vmatprep.subr.mxu0 %v520
    %638 = vmatpush2.msra.mxu0 %v519
    %639 = vmatprep.subr.mxu0 %v516
    %640 = vmatpush2.msra.mxu0 %v515
    %641 = vmatprep.subr.mxu0 %v512
    %642 = vmatpush2.msra.mxu0 %v511
    %643 = vmatprep.subr.mxu0 %v508
    %644 = vmatpush2.msra.mxu0 %v507
    %645 = vmatprep.subr.mxu0 %v504
    %646 = vmatpush2.msra.mxu0 %v503
    %647 = vmatprep.subr.mxu0 %v500
    %648 = vmatpush2.msra.mxu0 %v499
    %649 = vmatprep.mubr.f32.mxu0 %v432
    %650 = vmatmul.mubr.f32.gmra.mxu0 %v431
    %v651 = vpop.f32.mrf.mxu0
    %v652 = vadd.f32 %v568, %v651
    %v653 = vpop.f32.mrf.mxu0
    %v654 = vadd.f32 %v572, %v653
    %655 = vmatprep.mubr.f32.mxu0 %v434
    %656 = vmatmul.mubr.f32.gmra.mxu0 %v433
    %v657 = vpop.f32.mrf.mxu0
    %v658 = vadd.f32 %v568, %v657
    %v659 = vpop.f32.mrf.mxu0
    %v660 = vadd.f32 %v572, %v659
    %661 = vdwg.mxu0
    %662 = vmatprep.subr.mxu0 %v498
    %663 = vmatpush1.msra.mxu0 %v497
    %664 = vmatprep.subr.mxu0 %v494
    %665 = vmatpush1.msra.mxu0 %v493
    %666 = vmatprep.subr.mxu0 %v490
    %667 = vmatpush1.msra.mxu0 %v489
    %668 = vmatprep.subr.mxu0 %v486
    %669 = vmatpush1.msra.mxu0 %v485
    %670 = vmatprep.subr.mxu0 %v482
    %671 = vmatpush1.msra.mxu0 %v481
    %672 = vmatprep.subr.mxu0 %v478
    %673 = vmatpush1.msra.mxu0 %v477
    %674 = vmatprep.subr.mxu0 %v474
    %675 = vmatpush1.msra.mxu0 %v473
    %676 = vmatprep.subr.mxu0 %v470
    %677 = vmatpush1.msra.mxu0 %v469
    %678 = vmatprep.subr.mxu0 %v466
    %679 = vmatpush1.msra.mxu0 %v465
    %680 = vmatprep.subr.mxu0 %v462
    %681 = vmatpush1.msra.mxu0 %v461
    %682 = vmatprep.subr.mxu0 %v458
    %683 = vmatpush1.msra.mxu0 %v457
    %684 = vmatprep.subr.mxu0 %v454
    %685 = vmatpush1.msra.mxu0 %v453
    %686 = vmatprep.subr.mxu0 %v450
    %687 = vmatpush1.msra.mxu0 %v449
    %688 = vmatprep.subr.mxu0 %v446
    %689 = vmatpush1.msra.mxu0 %v445
    %690 = vmatprep.subr.mxu0 %v442
    %691 = vmatpush1.msra.mxu0 %v441
    %692 = vmatprep.subr.mxu0 %v438
    %693 = vmatpush1.msra.mxu0 %v437
    %694 = vmatprep.subr.mxu0 %v562
    %695 = vmatpush2.msra.mxu0 %v561
    %696 = vmatprep.subr.mxu0 %v558
    %697 = vmatpush2.msra.mxu0 %v557
    %698 = vmatprep.subr.mxu0 %v554
    %699 = vmatpush2.msra.mxu0 %v553
    %700 = vmatprep.subr.mxu0 %v550
    %701 = vmatpush2.msra.mxu0 %v549
    %702 = vmatprep.subr.mxu0 %v546
    %703 = vmatpush2.msra.mxu0 %v545
    %704 = vmatprep.subr.mxu0 %v542
    %705 = vmatpush2.msra.mxu0 %v541
    %706 = vmatprep.subr.mxu0 %v538
    %707 = vmatpush2.msra.mxu0 %v537
    %708 = vmatprep.subr.mxu0 %v534
    %709 = vmatpush2.msra.mxu0 %v533
    %710 = vmatprep.subr.mxu0 %v530
    %711 = vmatpush2.msra.mxu0 %v529
    %712 = vmatprep.subr.mxu0 %v526
    %713 = vmatpush2.msra.mxu0 %v525
    %714 = vmatprep.subr.mxu0 %v522
    %715 = vmatpush2.msra.mxu0 %v521
    %716 = vmatprep.subr.mxu0 %v518
    %717 = vmatpush2.msra.mxu0 %v517
    %718 = vmatprep.subr.mxu0 %v514
    %719 = vmatpush2.msra.mxu0 %v513
    %720 = vmatprep.subr.mxu0 %v510
    %721 = vmatpush2.msra.mxu0 %v509
    %722 = vmatprep.subr.mxu0 %v506
    %723 = vmatpush2.msra.mxu0 %v505
    %724 = vmatprep.subr.mxu0 %v502
    %725 = vmatpush2.msra.mxu0 %v501
    %726 = vmatprep.mubr.f32.mxu0 %v432
    %727 = vmatmul.mubr.f32.gmra.mxu0 %v431
    %v728 = vpop.f32.mrf.mxu0
    %v729 = vadd.f32 %v576, %v728
    %v730 = vpop.f32.mrf.mxu0
    %v731 = vadd.f32 %v580, %v730
    %732 = vmatprep.mubr.f32.mxu0 %v434
    %733 = vmatmul.mubr.f32.gmra.mxu0 %v433
    %v734 = vpop.f32.mrf.mxu0
    %v735 = vadd.f32 %v576, %v734
    %v736 = vpop.f32.mrf.mxu0
    %v737 = vadd.f32 %v580, %v736
    %738 = vdwg.mxu0
    %v739 = vmin.f32 %v652, 20.0
    %v740 = vmin.f32 %v654, 20.0
    %v741 = vmin.f32 %v729, 20.0
    %v742 = vmin.f32 %v731, 20.0
    %v743 = vmin.f32 %v658, 20.0
    %v744 = vmin.f32 %v660, 20.0
    %v745 = vmin.f32 %v735, 20.0
    %v746 = vmin.f32 %v737, 20.0
    %v747 = vmul.f32 %v739, 1.442695
    %v748 = vpow.pop %v747
    %v749 = vmul.f32 %v740, 1.442695
    %v750 = vpow.pop %v749
    %v751 = vmul.f32 %v741, 1.442695
    %v752 = vpow.pop %v751
    %v753 = vmul.f32 %v742, 1.442695
    %v754 = vpow.pop %v753
    %v755 = vmul.f32 %v743, 1.442695
    %v756 = vpow.pop %v755
    %v757 = vmul.f32 %v744, 1.442695
    %v758 = vpow.pop %v757
    %v759 = vmul.f32 %v745, 1.442695
    %v760 = vpow.pop %v759
    %v761 = vmul.f32 %v746, 1.442695
    %v762 = vpow.pop %v761
    %v763 = vadd.f32 %v748, 1.0
    %v764 = vadd.f32 %v750, 1.0
    %v765 = vadd.f32 %v752, 1.0
    %v766 = vadd.f32 %v754, 1.0
    %v767 = vadd.f32 %v756, 1.0
    %v768 = vadd.f32 %v758, 1.0
    %v769 = vadd.f32 %v760, 1.0
    %v770 = vadd.f32 %v762, 1.0
    %v771 = vmul.f32 %v763, %v763
    %v772 = vmul.f32 %v764, %v764
    %v773 = vmul.f32 %v765, %v765
    %v774 = vmul.f32 %v766, %v766
    %v775 = vmul.f32 %v767, %v767
    %v776 = vmul.f32 %v768, %v768
    %v777 = vmul.f32 %v769, %v769
    %v778 = vmul.f32 %v770, %v770
    %v779 = vsub.f32 %v771, 1.0
    %v780 = vsub.f32 %v772, 1.0
    %v781 = vsub.f32 %v773, 1.0
    %v782 = vsub.f32 %v774, 1.0
    %v783 = vsub.f32 %v775, 1.0
    %v784 = vsub.f32 %v776, 1.0
    %v785 = vsub.f32 %v777, 1.0
    %v786 = vsub.f32 %v778, 1.0
    %v787 = vadd.f32 %v771, 1.0
    %v788 = vadd.f32 %v772, 1.0
    %v789 = vadd.f32 %v773, 1.0
    %v790 = vadd.f32 %v774, 1.0
    %v791 = vadd.f32 %v775, 1.0
    %v792 = vadd.f32 %v776, 1.0
    %v793 = vadd.f32 %v777, 1.0
    %v794 = vadd.f32 %v778, 1.0
    %v795 = vrcp.pop %v787
    %v796 = vmul.f32 %v779, %v795
    %v797 = vrcp.pop %v788
    %v798 = vmul.f32 %v780, %v797
    %v799 = vrcp.pop %v789
    %v800 = vmul.f32 %v781, %v799
    %v801 = vrcp.pop %v790
    %v802 = vmul.f32 %v782, %v801
    %v803 = vrcp.pop %v791
    %v804 = vmul.f32 %v783, %v803
    %v805 = vrcp.pop %v792
    %v806 = vmul.f32 %v784, %v805
    %v807 = vrcp.pop %v793
    %v808 = vmul.f32 %v785, %v807
    %v809 = vrcp.pop %v794
    %v810 = vmul.f32 %v786, %v809
    %v811 = vmul.f32 %v652, %v796
    %v812 = vmul.f32 %v654, %v798
    %v813 = vmul.f32 %v729, %v800
    %v814 = vmul.f32 %v731, %v802
    %v815 = vmul.f32 %v658, %v804
    %v816 = vmul.f32 %v660, %v806
    %v817 = vmul.f32 %v735, %v808
    %v818 = vmul.f32 %v737, %v810
    %v819 = vld [vmem:[%s1] sm:$0xff]
    %v820 = vld [vmem:[%s1 + $0x8] sm:$0xff]
    %v821 = vld [vmem:[%s1 + $0x10] sm:$0xff]
    %v822 = vld [vmem:[%s1 + $0x18] sm:$0xff]
    %v823 = vld [vmem:[%s1 + $0x20] sm:$0xff]
    %v824 = vld [vmem:[%s1 + $0x28] sm:$0xff]
    %v825 = vld [vmem:[%s1 + $0x30] sm:$0xff]
    %v826 = vld [vmem:[%s1 + $0x38] sm:$0xff]
    %v827 = vmul.f32 %v811, %v819
    %v828 = vmul.f32 %v812, %v820
    %v829 = vmul.f32 %v813, %v821
    %v830 = vmul.f32 %v814, %v822
    %v831 = vmul.f32 %v815, %v823
    %v832 = vmul.f32 %v816, %v824
    %v833 = vmul.f32 %v817, %v825
    %v834 = vmul.f32 %v818, %v826
    %v835 = vld [vmem:[#allocation6] sm:$0xff]
    %v836 = vld [vmem:[#allocation6 + $0x8] sm:$0xff]
    %v837 = vld [vmem:[#allocation6 + $0x10] sm:$0xff]
    %v838 = vld [vmem:[#allocation6 + $0x18] sm:$0xff]
    %v839 = vld [vmem:[#allocation6 + $0x20] sm:$0xff]
    %v840 = vld [vmem:[#allocation6 + $0x28] sm:$0xff]
    %v841 = vld [vmem:[#allocation6 + $0x30] sm:$0xff]
    %v842 = vld [vmem:[#allocation6 + $0x38] sm:$0xff]
    %v843 = vld [vmem:[#allocation6 + $0x40] sm:$0xff]
    %v844 = vld [vmem:[#allocation6 + $0x48] sm:$0xff]
    %v845 = vld [vmem:[#allocation6 + $0x50] sm:$0xff]
    %v846 = vld [vmem:[#allocation6 + $0x58] sm:$0xff]
    %v847 = vld [vmem:[#allocation6 + $0x60] sm:$0xff]
    %v848 = vld [vmem:[#allocation6 + $0x68] sm:$0xff]
    %v849 = vld [vmem:[#allocation6 + $0x70] sm:$0xff]
    %v850 = vld [vmem:[#allocation6 + $0x78] sm:$0xff]
    %v851 = vld [vmem:[#allocation6 + $0x80] sm:$0xff]
    %v852 = vld [vmem:[#allocation6 + $0x88] sm:$0xff]
    %v853 = vld [vmem:[#allocation6 + $0x90] sm:$0xff]
    %v854 = vld [vmem:[#allocation6 + $0x98] sm:$0xff]
    %v855 = vld [vmem:[#allocation6 + $0xa0] sm:$0xff]
    %v856 = vld [vmem:[#allocation6 + $0xa8] sm:$0xff]
    %v857 = vld [vmem:[#allocation6 + $0xb0] sm:$0xff]
    %v858 = vld [vmem:[#allocation6 + $0xb8] sm:$0xff]
    %v859 = vld [vmem:[#allocation6 + $0xc0] sm:$0xff]
    %v860 = vld [vmem:[#allocation6 + $0xc8] sm:$0xff]
    %v861 = vld [vmem:[#allocation6 + $0xd0] sm:$0xff]
    %v862 = vld [vmem:[#allocation6 + $0xd8] sm:$0xff]
    %v863 = vld [vmem:[#allocation6 + $0xe0] sm:$0xff]
    %v864 = vld [vmem:[#allocation6 + $0xe8] sm:$0xff]
    %v865 = vld [vmem:[#allocation6 + $0xf0] sm:$0xff]
    %v866 = vld [vmem:[#allocation6 + $0xf8] sm:$0xff]
    %v867 = vld [vmem:[#allocation6 + $0x100] sm:$0xff]
    %v868 = vld [vmem:[#allocation6 + $0x108] sm:$0xff]
    %v869 = vld [vmem:[#allocation6 + $0x110] sm:$0xff]
    %v870 = vld [vmem:[#allocation6 + $0x118] sm:$0xff]
    %v871 = vld [vmem:[#allocation6 + $0x120] sm:$0xff]
    %v872 = vld [vmem:[#allocation6 + $0x128] sm:$0xff]
    %v873 = vld [vmem:[#allocation6 + $0x130] sm:$0xff]
    %v874 = vld [vmem:[#allocation6 + $0x138] sm:$0xff]
    %v875 = vld [vmem:[#allocation6 + $0x140] sm:$0xff]
    %v876 = vld [vmem:[#allocation6 + $0x148] sm:$0xff]
    %v877 = vld [vmem:[#allocation6 + $0x150] sm:$0xff]
    %v878 = vld [vmem:[#allocation6 + $0x158] sm:$0xff]
    %v879 = vld [vmem:[#allocation6 + $0x160] sm:$0xff]
    %v880 = vld [vmem:[#allocation6 + $0x168] sm:$0xff]
    %v881 = vld [vmem:[#allocation6 + $0x170] sm:$0xff]
    %v882 = vld [vmem:[#allocation6 + $0x178] sm:$0xff]
    %v883 = vld [vmem:[#allocation6 + $0x180] sm:$0xff]
    %v884 = vld [vmem:[#allocation6 + $0x188] sm:$0xff]
    %v885 = vld [vmem:[#allocation6 + $0x190] sm:$0xff]
    %v886 = vld [vmem:[#allocation6 + $0x198] sm:$0xff]
    %v887 = vld [vmem:[#allocation6 + $0x1a0] sm:$0xff]
    %v888 = vld [vmem:[#allocation6 + $0x1a8] sm:$0xff]
    %v889 = vld [vmem:[#allocation6 + $0x1b0] sm:$0xff]
    %v890 = vld [vmem:[#allocation6 + $0x1b8] sm:$0xff]
    %v891 = vld [vmem:[#allocation6 + $0x1c0] sm:$0xff]
    %v892 = vld [vmem:[#allocation6 + $0x1c8] sm:$0xff]
    %v893 = vld [vmem:[#allocation6 + $0x1d0] sm:$0xff]
    %v894 = vld [vmem:[#allocation6 + $0x1d8] sm:$0xff]
    %v895 = vld [vmem:[#allocation6 + $0x1e0] sm:$0xff]
    %v896 = vld [vmem:[#allocation6 + $0x1e8] sm:$0xff]
    %v897 = vld [vmem:[#allocation6 + $0x1f0] sm:$0xff]
    %v898 = vld [vmem:[#allocation6 + $0x1f8] sm:$0xff]
    %v899 = vld [vmem:[#allocation6 + $0x200] sm:$0xff]
    %v900 = vld [vmem:[#allocation6 + $0x208] sm:$0xff]
    %v901 = vld [vmem:[#allocation6 + $0x210] sm:$0xff]
    %v902 = vld [vmem:[#allocation6 + $0x218] sm:$0xff]
    %v903 = vld [vmem:[#allocation6 + $0x220] sm:$0xff]
    %v904 = vld [vmem:[#allocation6 + $0x228] sm:$0xff]
    %v905 = vld [vmem:[#allocation6 + $0x230] sm:$0xff]
    %v906 = vld [vmem:[#allocation6 + $0x238] sm:$0xff]
    %v907 = vld [vmem:[#allocation6 + $0x240] sm:$0xff]
    %v908 = vld [vmem:[#allocation6 + $0x248] sm:$0xff]
    %v909 = vld [vmem:[#allocation6 + $0x250] sm:$0xff]
    %v910 = vld [vmem:[#allocation6 + $0x258] sm:$0xff]
    %v911 = vld [vmem:[#allocation6 + $0x260] sm:$0xff]
    %v912 = vld [vmem:[#allocation6 + $0x268] sm:$0xff]
    %v913 = vld [vmem:[#allocation6 + $0x270] sm:$0xff]
    %v914 = vld [vmem:[#allocation6 + $0x278] sm:$0xff]
    %v915 = vld [vmem:[#allocation6 + $0x280] sm:$0xff]
    %v916 = vld [vmem:[#allocation6 + $0x288] sm:$0xff]
    %v917 = vld [vmem:[#allocation6 + $0x290] sm:$0xff]
    %v918 = vld [vmem:[#allocation6 + $0x298] sm:$0xff]
    %v919 = vld [vmem:[#allocation6 + $0x2a0] sm:$0xff]
    %v920 = vld [vmem:[#allocation6 + $0x2a8] sm:$0xff]
    %v921 = vld [vmem:[#allocation6 + $0x2b0] sm:$0xff]
    %v922 = vld [vmem:[#allocation6 + $0x2b8] sm:$0xff]
    %v923 = vld [vmem:[#allocation6 + $0x2c0] sm:$0xff]
    %v924 = vld [vmem:[#allocation6 + $0x2c8] sm:$0xff]
    %v925 = vld [vmem:[#allocation6 + $0x2d0] sm:$0xff]
    %v926 = vld [vmem:[#allocation6 + $0x2d8] sm:$0xff]
    %v927 = vld [vmem:[#allocation6 + $0x2e0] sm:$0xff]
    %v928 = vld [vmem:[#allocation6 + $0x2e8] sm:$0xff]
    %v929 = vld [vmem:[#allocation6 + $0x2f0] sm:$0xff]
    %v930 = vld [vmem:[#allocation6 + $0x2f8] sm:$0xff]
    %v931 = vld [vmem:[#allocation6 + $0x300] sm:$0xff]
    %v932 = vld [vmem:[#allocation6 + $0x308] sm:$0xff]
    %v933 = vld [vmem:[#allocation6 + $0x310] sm:$0xff]
    %v934 = vld [vmem:[#allocation6 + $0x318] sm:$0xff]
    %v935 = vld [vmem:[#allocation6 + $0x320] sm:$0xff]
    %v936 = vld [vmem:[#allocation6 + $0x328] sm:$0xff]
    %v937 = vld [vmem:[#allocation6 + $0x330] sm:$0xff]
    %v938 = vld [vmem:[#allocation6 + $0x338] sm:$0xff]
    %v939 = vld [vmem:[#allocation6 + $0x340] sm:$0xff]
    %v940 = vld [vmem:[#allocation6 + $0x348] sm:$0xff]
    %v941 = vld [vmem:[#allocation6 + $0x350] sm:$0xff]
    %v942 = vld [vmem:[#allocation6 + $0x358] sm:$0xff]
    %v943 = vld [vmem:[#allocation6 + $0x360] sm:$0xff]
    %v944 = vld [vmem:[#allocation6 + $0x368] sm:$0xff]
    %v945 = vld [vmem:[#allocation6 + $0x370] sm:$0xff]
    %v946 = vld [vmem:[#allocation6 + $0x378] sm:$0xff]
    %v947 = vld [vmem:[#allocation6 + $0x380] sm:$0xff]
    %v948 = vld [vmem:[#allocation6 + $0x388] sm:$0xff]
    %v949 = vld [vmem:[#allocation6 + $0x390] sm:$0xff]
    %v950 = vld [vmem:[#allocation6 + $0x398] sm:$0xff]
    %v951 = vld [vmem:[#allocation6 + $0x3a0] sm:$0xff]
    %v952 = vld [vmem:[#allocation6 + $0x3a8] sm:$0xff]
    %v953 = vld [vmem:[#allocation6 + $0x3b0] sm:$0xff]
    %v954 = vld [vmem:[#allocation6 + $0x3b8] sm:$0xff]
    %v955 = vld [vmem:[#allocation6 + $0x3c0] sm:$0xff]
    %v956 = vld [vmem:[#allocation6 + $0x3c8] sm:$0xff]
    %v957 = vld [vmem:[#allocation6 + $0x3d0] sm:$0xff]
    %v958 = vld [vmem:[#allocation6 + $0x3d8] sm:$0xff]
    %v959 = vld [vmem:[#allocation6 + $0x3e0] sm:$0xff]
    %v960 = vld [vmem:[#allocation6 + $0x3e8] sm:$0xff]
    %v961 = vld [vmem:[#allocation6 + $0x3f0] sm:$0xff]
    %v962 = vld [vmem:[#allocation6 + $0x3f8] sm:$0xff]
    %v963 = vld [vmem:[#allocation6 + $0x400] sm:$0xff]
    %v964 = vld [vmem:[#allocation6 + $0x408] sm:$0xff]
    %v965 = vld [vmem:[#allocation6 + $0x410] sm:$0xff]
    %v966 = vld [vmem:[#allocation6 + $0x418] sm:$0xff]
    %v967 = vld [vmem:[#allocation6 + $0x420] sm:$0xff]
    %v968 = vld [vmem:[#allocation6 + $0x428] sm:$0xff]
    %v969 = vld [vmem:[#allocation6 + $0x430] sm:$0xff]
    %v970 = vld [vmem:[#allocation6 + $0x438] sm:$0xff]
    %v971 = vld [vmem:[#allocation6 + $0x440] sm:$0xff]
    %v972 = vld [vmem:[#allocation6 + $0x448] sm:$0xff]
    %v973 = vld [vmem:[#allocation6 + $0x450] sm:$0xff]
    %v974 = vld [vmem:[#allocation6 + $0x458] sm:$0xff]
    %v975 = vld [vmem:[#allocation6 + $0x460] sm:$0xff]
    %v976 = vld [vmem:[#allocation6 + $0x468] sm:$0xff]
    %v977 = vld [vmem:[#allocation6 + $0x470] sm:$0xff]
    %v978 = vld [vmem:[#allocation6 + $0x478] sm:$0xff]
    %v979 = vld [vmem:[#allocation6 + $0x480] sm:$0xff]
    %v980 = vld [vmem:[#allocation6 + $0x488] sm:$0xff]
    %v981 = vld [vmem:[#allocation6 + $0x490] sm:$0xff]
    %v982 = vld [vmem:[#allocation6 + $0x498] sm:$0xff]
    %v983 = vld [vmem:[#allocation6 + $0x4a0] sm:$0xff]
    %v984 = vld [vmem:[#allocation6 + $0x4a8] sm:$0xff]
    %v985 = vld [vmem:[#allocation6 + $0x4b0] sm:$0xff]
    %v986 = vld [vmem:[#allocation6 + $0x4b8] sm:$0xff]
    %v987 = vld [vmem:[#allocation6 + $0x4c0] sm:$0xff]
    %v988 = vld [vmem:[#allocation6 + $0x4c8] sm:$0xff]
    %v989 = vld [vmem:[#allocation6 + $0x4d0] sm:$0xff]
    %v990 = vld [vmem:[#allocation6 + $0x4d8] sm:$0xff]
    %v991 = vld [vmem:[#allocation6 + $0x4e0] sm:$0xff]
    %v992 = vld [vmem:[#allocation6 + $0x4e8] sm:$0xff]
    %v993 = vld [vmem:[#allocation6 + $0x4f0] sm:$0xff]
    %v994 = vld [vmem:[#allocation6 + $0x4f8] sm:$0xff]
    %v995 = vld [vmem:[#allocation6 + $0x500] sm:$0xff]
    %v996 = vld [vmem:[#allocation6 + $0x508] sm:$0xff]
    %v997 = vld [vmem:[#allocation6 + $0x510] sm:$0xff]
    %v998 = vld [vmem:[#allocation6 + $0x518] sm:$0xff]
    %v999 = vld [vmem:[#allocation6 + $0x520] sm:$0xff]
    %v1000 = vld [vmem:[#allocation6 + $0x528] sm:$0xff]
    %v1001 = vld [vmem:[#allocation6 + $0x530] sm:$0xff]
    %v1002 = vld [vmem:[#allocation6 + $0x538] sm:$0xff]
    %v1003 = vld [vmem:[#allocation6 + $0x540] sm:$0xff]
    %v1004 = vld [vmem:[#allocation6 + $0x548] sm:$0xff]
    %v1005 = vld [vmem:[#allocation6 + $0x550] sm:$0xff]
    %v1006 = vld [vmem:[#allocation6 + $0x558] sm:$0xff]
    %v1007 = vld [vmem:[#allocation6 + $0x560] sm:$0xff]
    %v1008 = vld [vmem:[#allocation6 + $0x568] sm:$0xff]
    %v1009 = vld [vmem:[#allocation6 + $0x570] sm:$0xff]
    %v1010 = vld [vmem:[#allocation6 + $0x578] sm:$0xff]
    %v1011 = vld [vmem:[#allocation6 + $0x580] sm:$0xff]
    %v1012 = vld [vmem:[#allocation6 + $0x588] sm:$0xff]
    %v1013 = vld [vmem:[#allocation6 + $0x590] sm:$0xff]
    %v1014 = vld [vmem:[#allocation6 + $0x598] sm:$0xff]
    %v1015 = vld [vmem:[#allocation6 + $0x5a0] sm:$0xff]
    %v1016 = vld [vmem:[#allocation6 + $0x5a8] sm:$0xff]
    %v1017 = vld [vmem:[#allocation6 + $0x5b0] sm:$0xff]
    %v1018 = vld [vmem:[#allocation6 + $0x5b8] sm:$0xff]
    %v1019 = vld [vmem:[#allocation6 + $0x5c0] sm:$0xff]
    %v1020 = vld [vmem:[#allocation6 + $0x5c8] sm:$0xff]
    %v1021 = vld [vmem:[#allocation6 + $0x5d0] sm:$0xff]
    %v1022 = vld [vmem:[#allocation6 + $0x5d8] sm:$0xff]
    %v1023 = vld [vmem:[#allocation6 + $0x5e0] sm:$0xff]
    %v1024 = vld [vmem:[#allocation6 + $0x5e8] sm:$0xff]
    %v1025 = vld [vmem:[#allocation6 + $0x5f0] sm:$0xff]
    %v1026 = vld [vmem:[#allocation6 + $0x5f8] sm:$0xff]
    %v1027 = vld [vmem:[#allocation6 + $0x600] sm:$0xff]
    %v1028 = vld [vmem:[#allocation6 + $0x608] sm:$0xff]
    %v1029 = vld [vmem:[#allocation6 + $0x610] sm:$0xff]
    %v1030 = vld [vmem:[#allocation6 + $0x618] sm:$0xff]
    %v1031 = vld [vmem:[#allocation6 + $0x620] sm:$0xff]
    %v1032 = vld [vmem:[#allocation6 + $0x628] sm:$0xff]
    %v1033 = vld [vmem:[#allocation6 + $0x630] sm:$0xff]
    %v1034 = vld [vmem:[#allocation6 + $0x638] sm:$0xff]
    %v1035 = vld [vmem:[#allocation6 + $0x640] sm:$0xff]
    %v1036 = vld [vmem:[#allocation6 + $0x648] sm:$0xff]
    %v1037 = vld [vmem:[#allocation6 + $0x650] sm:$0xff]
    %v1038 = vld [vmem:[#allocation6 + $0x658] sm:$0xff]
    %v1039 = vld [vmem:[#allocation6 + $0x660] sm:$0xff]
    %v1040 = vld [vmem:[#allocation6 + $0x668] sm:$0xff]
    %v1041 = vld [vmem:[#allocation6 + $0x670] sm:$0xff]
    %v1042 = vld [vmem:[#allocation6 + $0x678] sm:$0xff]
    %v1043 = vld [vmem:[#allocation6 + $0x680] sm:$0xff]
    %v1044 = vld [vmem:[#allocation6 + $0x688] sm:$0xff]
    %v1045 = vld [vmem:[#allocation6 + $0x690] sm:$0xff]
    %v1046 = vld [vmem:[#allocation6 + $0x698] sm:$0xff]
    %v1047 = vld [vmem:[#allocation6 + $0x6a0] sm:$0xff]
    %v1048 = vld [vmem:[#allocation6 + $0x6a8] sm:$0xff]
    %v1049 = vld [vmem:[#allocation6 + $0x6b0] sm:$0xff]
    %v1050 = vld [vmem:[#allocation6 + $0x6b8] sm:$0xff]
    %v1051 = vld [vmem:[#allocation6 + $0x6c0] sm:$0xff]
    %v1052 = vld [vmem:[#allocation6 + $0x6c8] sm:$0xff]
    %v1053 = vld [vmem:[#allocation6 + $0x6d0] sm:$0xff]
    %v1054 = vld [vmem:[#allocation6 + $0x6d8] sm:$0xff]
    %v1055 = vld [vmem:[#allocation6 + $0x6e0] sm:$0xff]
    %v1056 = vld [vmem:[#allocation6 + $0x6e8] sm:$0xff]
    %v1057 = vld [vmem:[#allocation6 + $0x6f0] sm:$0xff]
    %v1058 = vld [vmem:[#allocation6 + $0x6f8] sm:$0xff]
    %v1059 = vld [vmem:[#allocation6 + $0x700] sm:$0xff]
    %v1060 = vld [vmem:[#allocation6 + $0x708] sm:$0xff]
    %v1061 = vld [vmem:[#allocation6 + $0x710] sm:$0xff]
    %v1062 = vld [vmem:[#allocation6 + $0x718] sm:$0xff]
    %v1063 = vld [vmem:[#allocation6 + $0x720] sm:$0xff]
    %v1064 = vld [vmem:[#allocation6 + $0x728] sm:$0xff]
    %v1065 = vld [vmem:[#allocation6 + $0x730] sm:$0xff]
    %v1066 = vld [vmem:[#allocation6 + $0x738] sm:$0xff]
    %v1067 = vld [vmem:[#allocation6 + $0x740] sm:$0xff]
    %v1068 = vld [vmem:[#allocation6 + $0x748] sm:$0xff]
    %v1069 = vld [vmem:[#allocation6 + $0x750] sm:$0xff]
    %v1070 = vld [vmem:[#allocation6 + $0x758] sm:$0xff]
    %v1071 = vld [vmem:[#allocation6 + $0x760] sm:$0xff]
    %v1072 = vld [vmem:[#allocation6 + $0x768] sm:$0xff]
    %v1073 = vld [vmem:[#allocation6 + $0x770] sm:$0xff]
    %v1074 = vld [vmem:[#allocation6 + $0x778] sm:$0xff]
    %v1075 = vld [vmem:[#allocation6 + $0x780] sm:$0xff]
    %v1076 = vld [vmem:[#allocation6 + $0x788] sm:$0xff]
    %v1077 = vld [vmem:[#allocation6 + $0x790] sm:$0xff]
    %v1078 = vld [vmem:[#allocation6 + $0x798] sm:$0xff]
    %v1079 = vld [vmem:[#allocation6 + $0x7a0] sm:$0xff]
    %v1080 = vld [vmem:[#allocation6 + $0x7a8] sm:$0xff]
    %v1081 = vld [vmem:[#allocation6 + $0x7b0] sm:$0xff]
    %v1082 = vld [vmem:[#allocation6 + $0x7b8] sm:$0xff]
    %v1083 = vld [vmem:[#allocation6 + $0x7c0] sm:$0xff]
    %v1084 = vld [vmem:[#allocation6 + $0x7c8] sm:$0xff]
    %v1085 = vld [vmem:[#allocation6 + $0x7d0] sm:$0xff]
    %v1086 = vld [vmem:[#allocation6 + $0x7d8] sm:$0xff]
    %v1087 = vld [vmem:[#allocation6 + $0x7e0] sm:$0xff]
    %v1088 = vld [vmem:[#allocation6 + $0x7e8] sm:$0xff]
    %v1089 = vld [vmem:[#allocation6 + $0x7f0] sm:$0xff]
    %v1090 = vld [vmem:[#allocation6 + $0x7f8] sm:$0xff]
    %v1091 = vld [vmem:[%s7] sm:$0xf]
    %v1093 = vlaneseq
    %v1094 = vshrl.u32 %v1093, 7
    %v1095 = vsub.s32 0, %v1094
    %v1096 = vrot.slane %v1091, %v1095
    %v1097 = vlaneseq
    %v1098 = vshrl.u32 %v1097, 7
    %v1099 = vsub.s32 1, %v1098
    %v1100 = vrot.slane %v1091, %v1099
    %v1101 = vlaneseq
    %v1102 = vshrl.u32 %v1101, 7
    %v1103 = vsub.s32 2, %v1102
    %v1104 = vrot.slane %v1091, %v1103
    %v1105 = vlaneseq
    %v1106 = vshrl.u32 %v1105, 7
    %v1107 = vsub.s32 3, %v1106
    %v1108 = vrot.slane %v1091, %v1107
    %1113 = vmatprep.subr.mxu0 %v896
    %1114 = vmatpush1.msra.mxu0 %v895
    %1115 = vmatprep.subr.mxu0 %v892
    %1116 = vmatpush1.msra.mxu0 %v891
    %1117 = vmatprep.subr.mxu0 %v888
    %1118 = vmatpush1.msra.mxu0 %v887
    %1119 = vmatprep.subr.mxu0 %v884
    %1120 = vmatpush1.msra.mxu0 %v883
    %1121 = vmatprep.subr.mxu0 %v880
    %1122 = vmatpush1.msra.mxu0 %v879
    %1123 = vmatprep.subr.mxu0 %v876
    %1124 = vmatpush1.msra.mxu0 %v875
    %1125 = vmatprep.subr.mxu0 %v872
    %1126 = vmatpush1.msra.mxu0 %v871
    %1127 = vmatprep.subr.mxu0 %v868
    %1128 = vmatpush1.msra.mxu0 %v867
    %1129 = vmatprep.subr.mxu0 %v864
    %1130 = vmatpush1.msra.mxu0 %v863
    %1131 = vmatprep.subr.mxu0 %v860
    %1132 = vmatpush1.msra.mxu0 %v859
    %1133 = vmatprep.subr.mxu0 %v856
    %1134 = vmatpush1.msra.mxu0 %v855
    %1135 = vmatprep.subr.mxu0 %v852
    %1136 = vmatpush1.msra.mxu0 %v851
    %1137 = vmatprep.subr.mxu0 %v848
    %1138 = vmatpush1.msra.mxu0 %v847
    %1139 = vmatprep.subr.mxu0 %v844
    %1140 = vmatpush1.msra.mxu0 %v843
    %1141 = vmatprep.subr.mxu0 %v840
    %1142 = vmatpush1.msra.mxu0 %v839
    %1143 = vmatprep.subr.mxu0 %v836
    %1144 = vmatpush1.msra.mxu0 %v835
    %1145 = vmatprep.subr.mxu0 %v960
    %1146 = vmatpush2.msra.mxu0 %v959
    %1147 = vmatprep.subr.mxu0 %v956
    %1148 = vmatpush2.msra.mxu0 %v955
    %1149 = vmatprep.subr.mxu0 %v952
    %1150 = vmatpush2.msra.mxu0 %v951
    %1151 = vmatprep.subr.mxu0 %v948
    %1152 = vmatpush2.msra.mxu0 %v947
    %1153 = vmatprep.subr.mxu0 %v944
    %1154 = vmatpush2.msra.mxu0 %v943
    %1155 = vmatprep.subr.mxu0 %v940
    %1156 = vmatpush2.msra.mxu0 %v939
    %1157 = vmatprep.subr.mxu0 %v936
    %1158 = vmatpush2.msra.mxu0 %v935
    %1159 = vmatprep.subr.mxu0 %v932
    %1160 = vmatpush2.msra.mxu0 %v931
    %1161 = vmatprep.subr.mxu0 %v928
    %1162 = vmatpush2.msra.mxu0 %v927
    %1163 = vmatprep.subr.mxu0 %v924
    %1164 = vmatpush2.msra.mxu0 %v923
    %1165 = vmatprep.subr.mxu0 %v920
    %1166 = vmatpush2.msra.mxu0 %v919
    %1167 = vmatprep.subr.mxu0 %v916
    %1168 = vmatpush2.msra.mxu0 %v915
    %1169 = vmatprep.subr.mxu0 %v912
    %1170 = vmatpush2.msra.mxu0 %v911
    %1171 = vmatprep.subr.mxu0 %v908
    %1172 = vmatpush2.msra.mxu0 %v907
    %1173 = vmatprep.subr.mxu0 %v904
    %1174 = vmatpush2.msra.mxu0 %v903
    %1175 = vmatprep.subr.mxu0 %v900
    %1176 = vmatpush2.msra.mxu0 %v899
    %1177 = vmatprep.mubr.f32.mxu0 %v828
    %1178 = vmatmul.mubr.f32.gmra.mxu0 %v827
    %v1179 = vpop.f32.mrf.mxu0
    %v1180 = vadd.f32 %v1096, %v1179
    %v1181 = vpop.f32.mrf.mxu0
    %v1182 = vadd.f32 %v1100, %v1181
    %1183 = vmatprep.mubr.f32.mxu0 %v832
    %1184 = vmatmul.mubr.f32.gmra.mxu0 %v831
    %v1185 = vpop.f32.mrf.mxu0
    %v1186 = vadd.f32 %v1096, %v1185
    %v1187 = vpop.f32.mrf.mxu0
    %v1188 = vadd.f32 %v1100, %v1187
    %1189 = vdwg.mxu0
    %1190 = vmatprep.subr.mxu0 %v1024
    %1191 = vmatpush1.msra.mxu0 %v1023
    %1192 = vmatprep.subr.mxu0 %v1020
    %1193 = vmatpush1.msra.mxu0 %v1019
    %1194 = vmatprep.subr.mxu0 %v1016
    %1195 = vmatpush1.msra.mxu0 %v1015
    %1196 = vmatprep.subr.mxu0 %v1012
    %1197 = vmatpush1.msra.mxu0 %v1011
    %1198 = vmatprep.subr.mxu0 %v1008
    %1199 = vmatpush1.msra.mxu0 %v1007
    %1200 = vmatprep.subr.mxu0 %v1004
    %1201 = vmatpush1.msra.mxu0 %v1003
    %1202 = vmatprep.subr.mxu0 %v1000
    %1203 = vmatpush1.msra.mxu0 %v999
    %1204 = vmatprep.subr.mxu0 %v996
    %1205 = vmatpush1.msra.mxu0 %v995
    %1206 = vmatprep.subr.mxu0 %v992
    %1207 = vmatpush1.msra.mxu0 %v991
    %1208 = vmatprep.subr.mxu0 %v988
    %1209 = vmatpush1.msra.mxu0 %v987
    %1210 = vmatprep.subr.mxu0 %v984
    %1211 = vmatpush1.msra.mxu0 %v983
    %1212 = vmatprep.subr.mxu0 %v980
    %1213 = vmatpush1.msra.mxu0 %v979
    %1214 = vmatprep.subr.mxu0 %v976
    %1215 = vmatpush1.msra.mxu0 %v975
    %1216 = vmatprep.subr.mxu0 %v972
    %1217 = vmatpush1.msra.mxu0 %v971
    %1218 = vmatprep.subr.mxu0 %v968
    %1219 = vmatpush1.msra.mxu0 %v967
    %1220 = vmatprep.subr.mxu0 %v964
    %1221 = vmatpush1.msra.mxu0 %v963
    %1222 = vmatprep.subr.mxu0 %v1088
    %1223 = vmatpush2.msra.mxu0 %v1087
    %1224 = vmatprep.subr.mxu0 %v1084
    %1225 = vmatpush2.msra.mxu0 %v1083
    %1226 = vmatprep.subr.mxu0 %v1080
    %1227 = vmatpush2.msra.mxu0 %v1079
    %1228 = vmatprep.subr.mxu0 %v1076
    %1229 = vmatpush2.msra.mxu0 %v1075
    %1230 = vmatprep.subr.mxu0 %v1072
    %1231 = vmatpush2.msra.mxu0 %v1071
    %1232 = vmatprep.subr.mxu0 %v1068
    %1233 = vmatpush2.msra.mxu0 %v1067
    %1234 = vmatprep.subr.mxu0 %v1064
    %1235 = vmatpush2.msra.mxu0 %v1063
    %1236 = vmatprep.subr.mxu0 %v1060
    %1237 = vmatpush2.msra.mxu0 %v1059
    %1238 = vmatprep.subr.mxu0 %v1056
    %1239 = vmatpush2.msra.mxu0 %v1055
    %1240 = vmatprep.subr.mxu0 %v1052
    %1241 = vmatpush2.msra.mxu0 %v1051
    %1242 = vmatprep.subr.mxu0 %v1048
    %1243 = vmatpush2.msra.mxu0 %v1047
    %1244 = vmatprep.subr.mxu0 %v1044
    %1245 = vmatpush2.msra.mxu0 %v1043
    %1246 = vmatprep.subr.mxu0 %v1040
    %1247 = vmatpush2.msra.mxu0 %v1039
    %1248 = vmatprep.subr.mxu0 %v1036
    %1249 = vmatpush2.msra.mxu0 %v1035
    %1250 = vmatprep.subr.mxu0 %v1032
    %1251 = vmatpush2.msra.mxu0 %v1031
    %1252 = vmatprep.subr.mxu0 %v1028
    %1253 = vmatpush2.msra.mxu0 %v1027
    %1254 = vmatprep.mubr.f32.mxu0 %v830
    %1255 = vmatmul.mubr.f32.gmra.mxu0 %v829
    %v1256 = vpop.f32.mrf.mxu0
    %v1257 = vadd.f32 %v1180, %v1256
    %v1258 = vpop.f32.mrf.mxu0
    %v1259 = vadd.f32 %v1182, %v1258
    %1260 = vmatprep.mubr.f32.mxu0 %v834
    %1261 = vmatmul.mubr.f32.gmra.mxu0 %v833
    %v1262 = vpop.f32.mrf.mxu0
    %v1263 = vadd.f32 %v1186, %v1262
    %v1264 = vpop.f32.mrf.mxu0
    %v1265 = vadd.f32 %v1188, %v1264
    %1266 = vdwg.mxu0
    %1267 = vmatprep.subr.mxu0 %v898
    %1268 = vmatpush1.msra.mxu0 %v897
    %1269 = vmatprep.subr.mxu0 %v894
    %1270 = vmatpush1.msra.mxu0 %v893
    %1271 = vmatprep.subr.mxu0 %v890
    %1272 = vmatpush1.msra.mxu0 %v889
    %1273 = vmatprep.subr.mxu0 %v886
    %1274 = vmatpush1.msra.mxu0 %v885
    %1275 = vmatprep.subr.mxu0 %v882
    %1276 = vmatpush1.msra.mxu0 %v881
    %1277 = vmatprep.subr.mxu0 %v878
    %1278 = vmatpush1.msra.mxu0 %v877
    %1279 = vmatprep.subr.mxu0 %v874
    %1280 = vmatpush1.msra.mxu0 %v873
    %1281 = vmatprep.subr.mxu0 %v870
    %1282 = vmatpush1.msra.mxu0 %v869
    %1283 = vmatprep.subr.mxu0 %v866
    %1284 = vmatpush1.msra.mxu0 %v865
    %1285 = vmatprep.subr.mxu0 %v862
    %1286 = vmatpush1.msra.mxu0 %v861
    %1287 = vmatprep.subr.mxu0 %v858
    %1288 = vmatpush1.msra.mxu0 %v857
    %1289 = vmatprep.subr.mxu0 %v854
    %1290 = vmatpush1.msra.mxu0 %v853
    %1291 = vmatprep.subr.mxu0 %v850
    %1292 = vmatpush1.msra.mxu0 %v849
    %1293 = vmatprep.subr.mxu0 %v846
    %1294 = vmatpush1.msra.mxu0 %v845
    %1295 = vmatprep.subr.mxu0 %v842
    %1296 = vmatpush1.msra.mxu0 %v841
    %1297 = vmatprep.subr.mxu0 %v838
    %1298 = vmatpush1.msra.mxu0 %v837
    %1299 = vmatprep.subr.mxu0 %v962
    %1300 = vmatpush2.msra.mxu0 %v961
    %1301 = vmatprep.subr.mxu0 %v958
    %1302 = vmatpush2.msra.mxu0 %v957
    %1303 = vmatprep.subr.mxu0 %v954
    %1304 = vmatpush2.msra.mxu0 %v953
    %1305 = vmatprep.subr.mxu0 %v950
    %1306 = vmatpush2.msra.mxu0 %v949
    %1307 = vmatprep.subr.mxu0 %v946
    %1308 = vmatpush2.msra.mxu0 %v945
    %1309 = vmatprep.subr.mxu0 %v942
    %1310 = vmatpush2.msra.mxu0 %v941
    %1311 = vmatprep.subr.mxu0 %v938
    %1312 = vmatpush2.msra.mxu0 %v937
    %1313 = vmatprep.subr.mxu0 %v934
    %1314 = vmatpush2.msra.mxu0 %v933
    %1315 = vmatprep.subr.mxu0 %v930
    %1316 = vmatpush2.msra.mxu0 %v929
    %1317 = vmatprep.subr.mxu0 %v926
    %1318 = vmatpush2.msra.mxu0 %v925
    %1319 = vmatprep.subr.mxu0 %v922
    %1320 = vmatpush2.msra.mxu0 %v921
    %1321 = vmatprep.subr.mxu0 %v918
    %1322 = vmatpush2.msra.mxu0 %v917
    %1323 = vmatprep.subr.mxu0 %v914
    %1324 = vmatpush2.msra.mxu0 %v913
    %1325 = vmatprep.subr.mxu0 %v910
    %1326 = vmatpush2.msra.mxu0 %v909
    %1327 = vmatprep.subr.mxu0 %v906
    %1328 = vmatpush2.msra.mxu0 %v905
    %1329 = vmatprep.subr.mxu0 %v902
    %1330 = vmatpush2.msra.mxu0 %v901
    %1331 = vmatprep.mubr.f32.mxu0 %v828
    %1332 = vmatmul.mubr.f32.gmra.mxu0 %v827
    %v1333 = vpop.f32.mrf.mxu0
    %v1334 = vadd.f32 %v1104, %v1333
    %v1335 = vpop.f32.mrf.mxu0
    %v1336 = vadd.f32 %v1108, %v1335
    %1337 = vmatprep.mubr.f32.mxu0 %v832
    %1338 = vmatmul.mubr.f32.gmra.mxu0 %v831
    %v1339 = vpop.f32.mrf.mxu0
    %v1340 = vadd.f32 %v1104, %v1339
    %v1341 = vpop.f32.mrf.mxu0
    %v1342 = vadd.f32 %v1108, %v1341
    %1343 = vdwg.mxu0
    %1344 = vmatprep.subr.mxu0 %v1026
    %1345 = vmatpush1.msra.mxu0 %v1025
    %1346 = vmatprep.subr.mxu0 %v1022
    %1347 = vmatpush1.msra.mxu0 %v1021
    %1348 = vmatprep.subr.mxu0 %v1018
    %1349 = vmatpush1.msra.mxu0 %v1017
    %1350 = vmatprep.subr.mxu0 %v1014
    %1351 = vmatpush1.msra.mxu0 %v1013
    %1352 = vmatprep.subr.mxu0 %v1010
    %1353 = vmatpush1.msra.mxu0 %v1009
    %1354 = vmatprep.subr.mxu0 %v1006
    %1355 = vmatpush1.msra.mxu0 %v1005
    %1356 = vmatprep.subr.mxu0 %v1002
    %1357 = vmatpush1.msra.mxu0 %v1001
    %1358 = vmatprep.subr.mxu0 %v998
    %1359 = vmatpush1.msra.mxu0 %v997
    %1360 = vmatprep.subr.mxu0 %v994
    %1361 = vmatpush1.msra.mxu0 %v993
    %1362 = vmatprep.subr.mxu0 %v990
    %1363 = vmatpush1.msra.mxu0 %v989
    %1364 = vmatprep.subr.mxu0 %v986
    %1365 = vmatpush1.msra.mxu0 %v985
    %1366 = vmatprep.subr.mxu0 %v982
    %1367 = vmatpush1.msra.mxu0 %v981
    %1368 = vmatprep.subr.mxu0 %v978
    %1369 = vmatpush1.msra.mxu0 %v977
    %1370 = vmatprep.subr.mxu0 %v974
    %1371 = vmatpush1.msra.mxu0 %v973
    %1372 = vmatprep.subr.mxu0 %v970
    %1373 = vmatpush1.msra.mxu0 %v969
    %1374 = vmatprep.subr.mxu0 %v966
    %1375 = vmatpush1.msra.mxu0 %v965
    %1376 = vmatprep.subr.mxu0 %v1090
    %1377 = vmatpush2.msra.mxu0 %v1089
    %1378 = vmatprep.subr.mxu0 %v1086
    %1379 = vmatpush2.msra.mxu0 %v1085
    %1380 = vmatprep.subr.mxu0 %v1082
    %1381 = vmatpush2.msra.mxu0 %v1081
    %1382 = vmatprep.subr.mxu0 %v1078
    %1383 = vmatpush2.msra.mxu0 %v1077
    %1384 = vmatprep.subr.mxu0 %v1074
    %1385 = vmatpush2.msra.mxu0 %v1073
    %1386 = vmatprep.subr.mxu0 %v1070
    %1387 = vmatpush2.msra.mxu0 %v1069
    %1388 = vmatprep.subr.mxu0 %v1066
    %1389 = vmatpush2.msra.mxu0 %v1065
    %1390 = vmatprep.subr.mxu0 %v1062
    %1391 = vmatpush2.msra.mxu0 %v1061
    %1392 = vmatprep.subr.mxu0 %v1058
    %1393 = vmatpush2.msra.mxu0 %v1057
    %1394 = vmatprep.subr.mxu0 %v1054
    %1395 = vmatpush2.msra.mxu0 %v1053
    %1396 = vmatprep.subr.mxu0 %v1050
    %1397 = vmatpush2.msra.mxu0 %v1049
    %1398 = vmatprep.subr.mxu0 %v1046
    %1399 = vmatpush2.msra.mxu0 %v1045
    %1400 = vmatprep.subr.mxu0 %v1042
    %1401 = vmatpush2.msra.mxu0 %v1041
    %1402 = vmatprep.subr.mxu0 %v1038
    %1403 = vmatpush2.msra.mxu0 %v1037
    %1404 = vmatprep.subr.mxu0 %v1034
    %1405 = vmatpush2.msra.mxu0 %v1033
    %1406 = vmatprep.subr.mxu0 %v1030
    %1407 = vmatpush2.msra.mxu0 %v1029
    %1408 = vmatprep.mubr.f32.mxu0 %v830
    %1409 = vmatmul.mubr.f32.gmra.mxu0 %v829
    %v1410 = vpop.f32.mrf.mxu0
    %v1411 = vadd.f32 %v1334, %v1410
    %v1412 = vpop.f32.mrf.mxu0
    %v1413 = vadd.f32 %v1336, %v1412
    %1414 = vmatprep.mubr.f32.mxu0 %v834
    %1415 = vmatmul.mubr.f32.gmra.mxu0 %v833
    %v1416 = vpop.f32.mrf.mxu0
    %v1417 = vadd.f32 %v1340, %v1416
    %v1418 = vpop.f32.mrf.mxu0
    %v1419 = vadd.f32 %v1342, %v1418
    %1420 = vdwg.mxu0
    %v1421 = vmin.f32 %v1257, 20.0
    %v1422 = vmin.f32 %v1259, 20.0
    %v1423 = vmin.f32 %v1411, 20.0
    %v1424 = vmin.f32 %v1413, 20.0
    %v1425 = vmin.f32 %v1263, 20.0
    %v1426 = vmin.f32 %v1265, 20.0
    %v1427 = vmin.f32 %v1417, 20.0
    %v1428 = vmin.f32 %v1419, 20.0
    %v1429 = vmul.f32 %v1421, 1.442695
    %v1430 = vpow.pop %v1429
    %v1431 = vmul.f32 %v1422, 1.442695
    %v1432 = vpow.pop %v1431
    %v1433 = vmul.f32 %v1423, 1.442695
    %v1434 = vpow.pop %v1433
    %v1435 = vmul.f32 %v1424, 1.442695
    %v1436 = vpow.pop %v1435
    %v1437 = vmul.f32 %v1425, 1.442695
    %v1438 = vpow.pop %v1437
    %v1439 = vmul.f32 %v1426, 1.442695
    %v1440 = vpow.pop %v1439
    %v1441 = vmul.f32 %v1427, 1.442695
    %v1442 = vpow.pop %v1441
    %v1443 = vmul.f32 %v1428, 1.442695
    %v1444 = vpow.pop %v1443
    %v1445 = vadd.f32 %v1430, 1.0
    %v1446 = vadd.f32 %v1432, 1.0
    %v1447 = vadd.f32 %v1434, 1.0
    %v1448 = vadd.f32 %v1436, 1.0
    %v1449 = vadd.f32 %v1438, 1.0
    %v1450 = vadd.f32 %v1440, 1.0
    %v1451 = vadd.f32 %v1442, 1.0
    %v1452 = vadd.f32 %v1444, 1.0
    %v1453 = vmul.f32 %v1445, %v1445
    %v1454 = vmul.f32 %v1446, %v1446
    %v1455 = vmul.f32 %v1447, %v1447
    %v1456 = vmul.f32 %v1448, %v1448
    %v1457 = vmul.f32 %v1449, %v1449
    %v1458 = vmul.f32 %v1450, %v1450
    %v1459 = vmul.f32 %v1451, %v1451
    %v1460 = vmul.f32 %v1452, %v1452
    %v1461 = vsub.f32 %v1453, 1.0
    %v1462 = vsub.f32 %v1454, 1.0
    %v1463 = vsub.f32 %v1455, 1.0
    %v1464 = vsub.f32 %v1456, 1.0
    %v1465 = vsub.f32 %v1457, 1.0
    %v1466 = vsub.f32 %v1458, 1.0
    %v1467 = vsub.f32 %v1459, 1.0
    %v1468 = vsub.f32 %v1460, 1.0
    %v1469 = vadd.f32 %v1453, 1.0
    %v1470 = vadd.f32 %v1454, 1.0
    %v1471 = vadd.f32 %v1455, 1.0
    %v1472 = vadd.f32 %v1456, 1.0
    %v1473 = vadd.f32 %v1457, 1.0
    %v1474 = vadd.f32 %v1458, 1.0
    %v1475 = vadd.f32 %v1459, 1.0
    %v1476 = vadd.f32 %v1460, 1.0
    %v1477 = vrcp.pop %v1469
    %v1478 = vmul.f32 %v1461, %v1477
    %v1479 = vrcp.pop %v1470
    %v1480 = vmul.f32 %v1462, %v1479
    %v1481 = vrcp.pop %v1471
    %v1482 = vmul.f32 %v1463, %v1481
    %v1483 = vrcp.pop %v1472
    %v1484 = vmul.f32 %v1464, %v1483
    %v1485 = vrcp.pop %v1473
    %v1486 = vmul.f32 %v1465, %v1485
    %v1487 = vrcp.pop %v1474
    %v1488 = vmul.f32 %v1466, %v1487
    %v1489 = vrcp.pop %v1475
    %v1490 = vmul.f32 %v1467, %v1489
    %v1491 = vrcp.pop %v1476
    %v1492 = vmul.f32 %v1468, %v1491
    %v1493 = vmul.f32 %v1257, %v1478
    %v1494 = vmul.f32 %v1259, %v1480
    %v1495 = vmul.f32 %v1411, %v1482
    %v1496 = vmul.f32 %v1413, %v1484
    %v1497 = vmul.f32 %v1263, %v1486
    %v1498 = vmul.f32 %v1265, %v1488
    %v1499 = vmul.f32 %v1417, %v1490
    %v1500 = vmul.f32 %v1419, %v1492
    %v1501 = vld [vmem:[#allocation7] sm:$0xff]
    %v1502 = vld [vmem:[#allocation7 + $0x8] sm:$0xff]
    %v1503 = vld [vmem:[#allocation7 + $0x10] sm:$0xff]
    %v1504 = vld [vmem:[#allocation7 + $0x18] sm:$0xff]
    %v1505 = vld [vmem:[#allocation7 + $0x20] sm:$0xff]
    %v1506 = vld [vmem:[#allocation7 + $0x28] sm:$0xff]
    %v1507 = vld [vmem:[#allocation7 + $0x30] sm:$0xff]
    %v1508 = vld [vmem:[#allocation7 + $0x38] sm:$0xff]
    %v1509 = vld [vmem:[#allocation7 + $0x40] sm:$0xff]
    %v1510 = vld [vmem:[#allocation7 + $0x48] sm:$0xff]
    %v1511 = vld [vmem:[#allocation7 + $0x50] sm:$0xff]
    %v1512 = vld [vmem:[#allocation7 + $0x58] sm:$0xff]
    %v1513 = vld [vmem:[#allocation7 + $0x60] sm:$0xff]
    %v1514 = vld [vmem:[#allocation7 + $0x68] sm:$0xff]
    %v1515 = vld [vmem:[#allocation7 + $0x70] sm:$0xff]
    %v1516 = vld [vmem:[#allocation7 + $0x78] sm:$0xff]
    %v1517 = vld [vmem:[#allocation7 + $0x80] sm:$0xff]
    %v1518 = vld [vmem:[#allocation7 + $0x88] sm:$0xff]
    %v1519 = vld [vmem:[#allocation7 + $0x90] sm:$0xff]
    %v1520 = vld [vmem:[#allocation7 + $0x98] sm:$0xff]
    %v1521 = vld [vmem:[#allocation7 + $0xa0] sm:$0xff]
    %v1522 = vld [vmem:[#allocation7 + $0xa8] sm:$0xff]
    %v1523 = vld [vmem:[#allocation7 + $0xb0] sm:$0xff]
    %v1524 = vld [vmem:[#allocation7 + $0xb8] sm:$0xff]
    %v1525 = vld [vmem:[#allocation7 + $0xc0] sm:$0xff]
    %v1526 = vld [vmem:[#allocation7 + $0xc8] sm:$0xff]
    %v1527 = vld [vmem:[#allocation7 + $0xd0] sm:$0xff]
    %v1528 = vld [vmem:[#allocation7 + $0xd8] sm:$0xff]
    %v1529 = vld [vmem:[#allocation7 + $0xe0] sm:$0xff]
    %v1530 = vld [vmem:[#allocation7 + $0xe8] sm:$0xff]
    %v1531 = vld [vmem:[#allocation7 + $0xf0] sm:$0xff]
    %v1532 = vld [vmem:[#allocation7 + $0xf8] sm:$0xff]
    %v1533 = vld [vmem:[#allocation7 + $0x100] sm:$0xff]
    %v1534 = vld [vmem:[#allocation7 + $0x108] sm:$0xff]
    %v1535 = vld [vmem:[#allocation7 + $0x110] sm:$0xff]
    %v1536 = vld [vmem:[#allocation7 + $0x118] sm:$0xff]
    %v1537 = vld [vmem:[#allocation7 + $0x120] sm:$0xff]
    %v1538 = vld [vmem:[#allocation7 + $0x128] sm:$0xff]
    %v1539 = vld [vmem:[#allocation7 + $0x130] sm:$0xff]
    %v1540 = vld [vmem:[#allocation7 + $0x138] sm:$0xff]
    %v1541 = vld [vmem:[#allocation7 + $0x140] sm:$0xff]
    %v1542 = vld [vmem:[#allocation7 + $0x148] sm:$0xff]
    %v1543 = vld [vmem:[#allocation7 + $0x150] sm:$0xff]
    %v1544 = vld [vmem:[#allocation7 + $0x158] sm:$0xff]
    %v1545 = vld [vmem:[#allocation7 + $0x160] sm:$0xff]
    %v1546 = vld [vmem:[#allocation7 + $0x168] sm:$0xff]
    %v1547 = vld [vmem:[#allocation7 + $0x170] sm:$0xff]
    %v1548 = vld [vmem:[#allocation7 + $0x178] sm:$0xff]
    %v1549 = vld [vmem:[#allocation7 + $0x180] sm:$0xff]
    %v1550 = vld [vmem:[#allocation7 + $0x188] sm:$0xff]
    %v1551 = vld [vmem:[#allocation7 + $0x190] sm:$0xff]
    %v1552 = vld [vmem:[#allocation7 + $0x198] sm:$0xff]
    %v1553 = vld [vmem:[#allocation7 + $0x1a0] sm:$0xff]
    %v1554 = vld [vmem:[#allocation7 + $0x1a8] sm:$0xff]
    %v1555 = vld [vmem:[#allocation7 + $0x1b0] sm:$0xff]
    %v1556 = vld [vmem:[#allocation7 + $0x1b8] sm:$0xff]
    %v1557 = vld [vmem:[#allocation7 + $0x1c0] sm:$0xff]
    %v1558 = vld [vmem:[#allocation7 + $0x1c8] sm:$0xff]
    %v1559 = vld [vmem:[#allocation7 + $0x1d0] sm:$0xff]
    %v1560 = vld [vmem:[#allocation7 + $0x1d8] sm:$0xff]
    %v1561 = vld [vmem:[#allocation7 + $0x1e0] sm:$0xff]
    %v1562 = vld [vmem:[#allocation7 + $0x1e8] sm:$0xff]
    %v1563 = vld [vmem:[#allocation7 + $0x1f0] sm:$0xff]
    %v1564 = vld [vmem:[#allocation7 + $0x1f8] sm:$0xff]
    %v1565 = vld [vmem:[#allocation7 + $0x200] sm:$0xff]
    %v1566 = vld [vmem:[#allocation7 + $0x208] sm:$0xff]
    %v1567 = vld [vmem:[#allocation7 + $0x210] sm:$0xff]
    %v1568 = vld [vmem:[#allocation7 + $0x218] sm:$0xff]
    %v1569 = vld [vmem:[#allocation7 + $0x220] sm:$0xff]
    %v1570 = vld [vmem:[#allocation7 + $0x228] sm:$0xff]
    %v1571 = vld [vmem:[#allocation7 + $0x230] sm:$0xff]
    %v1572 = vld [vmem:[#allocation7 + $0x238] sm:$0xff]
    %v1573 = vld [vmem:[#allocation7 + $0x240] sm:$0xff]
    %v1574 = vld [vmem:[#allocation7 + $0x248] sm:$0xff]
    %v1575 = vld [vmem:[#allocation7 + $0x250] sm:$0xff]
    %v1576 = vld [vmem:[#allocation7 + $0x258] sm:$0xff]
    %v1577 = vld [vmem:[#allocation7 + $0x260] sm:$0xff]
    %v1578 = vld [vmem:[#allocation7 + $0x268] sm:$0xff]
    %v1579 = vld [vmem:[#allocation7 + $0x270] sm:$0xff]
    %v1580 = vld [vmem:[#allocation7 + $0x278] sm:$0xff]
    %v1581 = vld [vmem:[#allocation7 + $0x280] sm:$0xff]
    %v1582 = vld [vmem:[#allocation7 + $0x288] sm:$0xff]
    %v1583 = vld [vmem:[#allocation7 + $0x290] sm:$0xff]
    %v1584 = vld [vmem:[#allocation7 + $0x298] sm:$0xff]
    %v1585 = vld [vmem:[#allocation7 + $0x2a0] sm:$0xff]
    %v1586 = vld [vmem:[#allocation7 + $0x2a8] sm:$0xff]
    %v1587 = vld [vmem:[#allocation7 + $0x2b0] sm:$0xff]
    %v1588 = vld [vmem:[#allocation7 + $0x2b8] sm:$0xff]
    %v1589 = vld [vmem:[#allocation7 + $0x2c0] sm:$0xff]
    %v1590 = vld [vmem:[#allocation7 + $0x2c8] sm:$0xff]
    %v1591 = vld [vmem:[#allocation7 + $0x2d0] sm:$0xff]
    %v1592 = vld [vmem:[#allocation7 + $0x2d8] sm:$0xff]
    %v1593 = vld [vmem:[#allocation7 + $0x2e0] sm:$0xff]
    %v1594 = vld [vmem:[#allocation7 + $0x2e8] sm:$0xff]
    %v1595 = vld [vmem:[#allocation7 + $0x2f0] sm:$0xff]
    %v1596 = vld [vmem:[#allocation7 + $0x2f8] sm:$0xff]
    %v1597 = vld [vmem:[#allocation7 + $0x300] sm:$0xff]
    %v1598 = vld [vmem:[#allocation7 + $0x308] sm:$0xff]
    %v1599 = vld [vmem:[#allocation7 + $0x310] sm:$0xff]
    %v1600 = vld [vmem:[#allocation7 + $0x318] sm:$0xff]
    %v1601 = vld [vmem:[#allocation7 + $0x320] sm:$0xff]
    %v1602 = vld [vmem:[#allocation7 + $0x328] sm:$0xff]
    %v1603 = vld [vmem:[#allocation7 + $0x330] sm:$0xff]
    %v1604 = vld [vmem:[#allocation7 + $0x338] sm:$0xff]
    %v1605 = vld [vmem:[#allocation7 + $0x340] sm:$0xff]
    %v1606 = vld [vmem:[#allocation7 + $0x348] sm:$0xff]
    %v1607 = vld [vmem:[#allocation7 + $0x350] sm:$0xff]
    %v1608 = vld [vmem:[#allocation7 + $0x358] sm:$0xff]
    %v1609 = vld [vmem:[#allocation7 + $0x360] sm:$0xff]
    %v1610 = vld [vmem:[#allocation7 + $0x368] sm:$0xff]
    %v1611 = vld [vmem:[#allocation7 + $0x370] sm:$0xff]
    %v1612 = vld [vmem:[#allocation7 + $0x378] sm:$0xff]
    %v1613 = vld [vmem:[#allocation7 + $0x380] sm:$0xff]
    %v1614 = vld [vmem:[#allocation7 + $0x388] sm:$0xff]
    %v1615 = vld [vmem:[#allocation7 + $0x390] sm:$0xff]
    %v1616 = vld [vmem:[#allocation7 + $0x398] sm:$0xff]
    %v1617 = vld [vmem:[#allocation7 + $0x3a0] sm:$0xff]
    %v1618 = vld [vmem:[#allocation7 + $0x3a8] sm:$0xff]
    %v1619 = vld [vmem:[#allocation7 + $0x3b0] sm:$0xff]
    %v1620 = vld [vmem:[#allocation7 + $0x3b8] sm:$0xff]
    %v1621 = vld [vmem:[#allocation7 + $0x3c0] sm:$0xff]
    %v1622 = vld [vmem:[#allocation7 + $0x3c8] sm:$0xff]
    %v1623 = vld [vmem:[#allocation7 + $0x3d0] sm:$0xff]
    %v1624 = vld [vmem:[#allocation7 + $0x3d8] sm:$0xff]
    %v1625 = vld [vmem:[#allocation7 + $0x3e0] sm:$0xff]
    %v1626 = vld [vmem:[#allocation7 + $0x3e8] sm:$0xff]
    %v1627 = vld [vmem:[#allocation7 + $0x3f0] sm:$0xff]
    %v1628 = vld [vmem:[#allocation7 + $0x3f8] sm:$0xff]
    %v1629 = vld [vmem:[%s9] sm:$0x3]
    %v1631 = vlaneseq
    %v1632 = vshrl.u32 %v1631, 7
    %v1633 = vsub.s32 0, %v1632
    %v1634 = vrot.slane %v1629, %v1633
    %v1635 = vlaneseq
    %v1636 = vshrl.u32 %v1635, 7
    %v1637 = vsub.s32 1, %v1636
    %v1638 = vrot.slane %v1629, %v1637
    %1641 = vmatprep.subr.mxu0 %v1532
    %1642 = vmatpush1.msra.mxu0 %v1531
    %1643 = vmatprep.subr.mxu0 %v1530
    %1644 = vmatpush1.msra.mxu0 %v1529
    %1645 = vmatprep.subr.mxu0 %v1528
    %1646 = vmatpush1.msra.mxu0 %v1527
    %1647 = vmatprep.subr.mxu0 %v1526
    %1648 = vmatpush1.msra.mxu0 %v1525
    %1649 = vmatprep.subr.mxu0 %v1524
    %1650 = vmatpush1.msra.mxu0 %v1523
    %1651 = vmatprep.subr.mxu0 %v1522
    %1652 = vmatpush1.msra.mxu0 %v1521
    %1653 = vmatprep.subr.mxu0 %v1520
    %1654 = vmatpush1.msra.mxu0 %v1519
    %1655 = vmatprep.subr.mxu0 %v1518
    %1656 = vmatpush1.msra.mxu0 %v1517
    %1657 = vmatprep.subr.mxu0 %v1516
    %1658 = vmatpush1.msra.mxu0 %v1515
    %1659 = vmatprep.subr.mxu0 %v1514
    %1660 = vmatpush1.msra.mxu0 %v1513
    %1661 = vmatprep.subr.mxu0 %v1512
    %1662 = vmatpush1.msra.mxu0 %v1511
    %1663 = vmatprep.subr.mxu0 %v1510
    %1664 = vmatpush1.msra.mxu0 %v1509
    %1665 = vmatprep.subr.mxu0 %v1508
    %1666 = vmatpush1.msra.mxu0 %v1507
    %1667 = vmatprep.subr.mxu0 %v1506
    %1668 = vmatpush1.msra.mxu0 %v1505
    %1669 = vmatprep.subr.mxu0 %v1504
    %1670 = vmatpush1.msra.mxu0 %v1503
    %1671 = vmatprep.subr.mxu0 %v1502
    %1672 = vmatpush1.msra.mxu0 %v1501
    %1673 = vmatprep.subr.mxu0 %v1564
    %1674 = vmatpush2.msra.mxu0 %v1563
    %1675 = vmatprep.subr.mxu0 %v1562
    %1676 = vmatpush2.msra.mxu0 %v1561
    %1677 = vmatprep.subr.mxu0 %v1560
    %1678 = vmatpush2.msra.mxu0 %v1559
    %1679 = vmatprep.subr.mxu0 %v1558
    %1680 = vmatpush2.msra.mxu0 %v1557
    %1681 = vmatprep.subr.mxu0 %v1556
    %1682 = vmatpush2.msra.mxu0 %v1555
    %1683 = vmatprep.subr.mxu0 %v1554
    %1684 = vmatpush2.msra.mxu0 %v1553
    %1685 = vmatprep.subr.mxu0 %v1552
    %1686 = vmatpush2.msra.mxu0 %v1551
    %1687 = vmatprep.subr.mxu0 %v1550
    %1688 = vmatpush2.msra.mxu0 %v1549
    %1689 = vmatprep.subr.mxu0 %v1548
    %1690 = vmatpush2.msra.mxu0 %v1547
    %1691 = vmatprep.subr.mxu0 %v1546
    %1692 = vmatpush2.msra.mxu0 %v1545
    %1693 = vmatprep.subr.mxu0 %v1544
    %1694 = vmatpush2.msra.mxu0 %v1543
    %1695 = vmatprep.subr.mxu0 %v1542
    %1696 = vmatpush2.msra.mxu0 %v1541
    %1697 = vmatprep.subr.mxu0 %v1540
    %1698 = vmatpush2.msra.mxu0 %v1539
    %1699 = vmatprep.subr.mxu0 %v1538
    %1700 = vmatpush2.msra.mxu0 %v1537
    %1701 = vmatprep.subr.mxu0 %v1536
    %1702 = vmatpush2.msra.mxu0 %v1535
    %1703 = vmatprep.subr.mxu0 %v1534
    %1704 = vmatpush2.msra.mxu0 %v1533
    %1705 = vmatprep.mubr.f32.mxu0 %v1494
    %1706 = vmatmul.mubr.f32.gmra.mxu0 %v1493
    %v1707 = vpop.f32.mrf.mxu0
    %v1708 = vadd.f32 %v1634, %v1707
    %v1709 = vpop.f32.mrf.mxu0
    %v1710 = vadd.f32 %v1638, %v1709
    %1711 = vmatprep.mubr.f32.mxu0 %v1498
    %1712 = vmatmul.mubr.f32.gmra.mxu0 %v1497
    %v1713 = vpop.f32.mrf.mxu0
    %v1714 = vadd.f32 %v1634, %v1713
    %v1715 = vpop.f32.mrf.mxu0
    %v1716 = vadd.f32 %v1638, %v1715
    %1717 = vdwg.mxu0
    %1718 = vmatprep.subr.mxu0 %v1596
    %1719 = vmatpush1.msra.mxu0 %v1595
    %1720 = vmatprep.subr.mxu0 %v1594
    %1721 = vmatpush1.msra.mxu0 %v1593
    %1722 = vmatprep.subr.mxu0 %v1592
    %1723 = vmatpush1.msra.mxu0 %v1591
    %1724 = vmatprep.subr.mxu0 %v1590
    %1725 = vmatpush1.msra.mxu0 %v1589
    %1726 = vmatprep.subr.mxu0 %v1588
    %1727 = vmatpush1.msra.mxu0 %v1587
    %1728 = vmatprep.subr.mxu0 %v1586
    %1729 = vmatpush1.msra.mxu0 %v1585
    %1730 = vmatprep.subr.mxu0 %v1584
    %1731 = vmatpush1.msra.mxu0 %v1583
    %1732 = vmatprep.subr.mxu0 %v1582
    %1733 = vmatpush1.msra.mxu0 %v1581
    %1734 = vmatprep.subr.mxu0 %v1580
    %1735 = vmatpush1.msra.mxu0 %v1579
    %1736 = vmatprep.subr.mxu0 %v1578
    %1737 = vmatpush1.msra.mxu0 %v1577
    %1738 = vmatprep.subr.mxu0 %v1576
    %1739 = vmatpush1.msra.mxu0 %v1575
    %1740 = vmatprep.subr.mxu0 %v1574
    %1741 = vmatpush1.msra.mxu0 %v1573
    %1742 = vmatprep.subr.mxu0 %v1572
    %1743 = vmatpush1.msra.mxu0 %v1571
    %1744 = vmatprep.subr.mxu0 %v1570
    %1745 = vmatpush1.msra.mxu0 %v1569
    %1746 = vmatprep.subr.mxu0 %v1568
    %1747 = vmatpush1.msra.mxu0 %v1567
    %1748 = vmatprep.subr.mxu0 %v1566
    %1749 = vmatpush1.msra.mxu0 %v1565
    %1750 = vmatprep.subr.mxu0 %v1628
    %1751 = vmatpush2.msra.mxu0 %v1627
    %1752 = vmatprep.subr.mxu0 %v1626
    %1753 = vmatpush2.msra.mxu0 %v1625
    %1754 = vmatprep.subr.mxu0 %v1624
    %1755 = vmatpush2.msra.mxu0 %v1623
    %1756 = vmatprep.subr.mxu0 %v1622
    %1757 = vmatpush2.msra.mxu0 %v1621
    %1758 = vmatprep.subr.mxu0 %v1620
    %1759 = vmatpush2.msra.mxu0 %v1619
    %1760 = vmatprep.subr.mxu0 %v1618
    %1761 = vmatpush2.msra.mxu0 %v1617
    %1762 = vmatprep.subr.mxu0 %v1616
    %1763 = vmatpush2.msra.mxu0 %v1615
    %1764 = vmatprep.subr.mxu0 %v1614
    %1765 = vmatpush2.msra.mxu0 %v1613
    %1766 = vmatprep.subr.mxu0 %v1612
    %1767 = vmatpush2.msra.mxu0 %v1611
    %1768 = vmatprep.subr.mxu0 %v1610
    %1769 = vmatpush2.msra.mxu0 %v1609
    %1770 = vmatprep.subr.mxu0 %v1608
    %1771 = vmatpush2.msra.mxu0 %v1607
    %1772 = vmatprep.subr.mxu0 %v1606
    %1773 = vmatpush2.msra.mxu0 %v1605
    %1774 = vmatprep.subr.mxu0 %v1604
    %1775 = vmatpush2.msra.mxu0 %v1603
    %1776 = vmatprep.subr.mxu0 %v1602
    %1777 = vmatpush2.msra.mxu0 %v1601
    %1778 = vmatprep.subr.mxu0 %v1600
    %1779 = vmatpush2.msra.mxu0 %v1599
    %1780 = vmatprep.subr.mxu0 %v1598
    %1781 = vmatpush2.msra.mxu0 %v1597
    %1782 = vmatprep.mubr.f32.mxu0 %v1496
    %1783 = vmatmul.mubr.f32.gmra.mxu0 %v1495
    %v1784 = vpop.f32.mrf.mxu0
    %v1785 = vadd.f32 %v1708, %v1784
    %v1786 = vpop.f32.mrf.mxu0
    %v1787 = vadd.f32 %v1710, %v1786
    %1788 = vmatprep.mubr.f32.mxu0 %v1500
    %1789 = vmatmul.mubr.f32.gmra.mxu0 %v1499
    %v1790 = vpop.f32.mrf.mxu0
    %v1791 = vadd.f32 %v1714, %v1790
    %v1792 = vpop.f32.mrf.mxu0
    %v1793 = vadd.f32 %v1716, %v1792
    %1794 = vdwg.mxu0
    %v1795 = vmin.f32 %v1785, 20.0
    %v1796 = vmin.f32 %v1787, 20.0
    %v1797 = vmin.f32 %v1791, 20.0
    %v1798 = vmin.f32 %v1793, 20.0
    %v1799 = vmul.f32 %v1795, 1.442695
    %v1800 = vpow.pop %v1799
    %v1801 = vmul.f32 %v1796, 1.442695
    %v1802 = vpow.pop %v1801
    %v1803 = vmul.f32 %v1797, 1.442695
    %v1804 = vpow.pop %v1803
    %v1805 = vmul.f32 %v1798, 1.442695
    %v1806 = vpow.pop %v1805
    %v1807 = vadd.f32 %v1800, 1.0
    %v1808 = vadd.f32 %v1802, 1.0
    %v1809 = vadd.f32 %v1804, 1.0
    %v1810 = vadd.f32 %v1806, 1.0
    %v1811 = vmul.f32 %v1807, %v1807
    %v1812 = vmul.f32 %v1808, %v1808
    %v1813 = vmul.f32 %v1809, %v1809
    %v1814 = vmul.f32 %v1810, %v1810
    %v1815 = vsub.f32 %v1811, 1.0
    %v1816 = vsub.f32 %v1812, 1.0
    %v1817 = vsub.f32 %v1813, 1.0
    %v1818 = vsub.f32 %v1814, 1.0
    %v1819 = vadd.f32 %v1811, 1.0
    %v1820 = vadd.f32 %v1812, 1.0
    %v1821 = vadd.f32 %v1813, 1.0
    %v1822 = vadd.f32 %v1814, 1.0
    %v1823 = vrcp.pop %v1819
    %v1824 = vmul.f32 %v1815, %v1823
    %v1825 = vrcp.pop %v1820
    %v1826 = vmul.f32 %v1816, %v1825
    %v1827 = vrcp.pop %v1821
    %v1828 = vmul.f32 %v1817, %v1827
    %v1829 = vrcp.pop %v1822
    %v1830 = vmul.f32 %v1818, %v1829
    %v1831 = vmul.f32 %v1785, %v1824
    %v1832 = vmul.f32 %v1787, %v1826
    %v1833 = vmul.f32 %v1791, %v1828
    %v1834 = vmul.f32 %v1793, %v1830
    %v1835 = vld [vmem:[%s10] sm:$0xff]
    %v1836 = vld [vmem:[%s10 + $0x8] sm:$0xff]
    %v1837 = vld [vmem:[%s10 + $0x10] sm:$0xff]
    %v1838 = vld [vmem:[%s10 + $0x18] sm:$0xff]
    %v1839 = vld [vmem:[%s10 + $0x20] sm:$0xff]
    %v1840 = vld [vmem:[%s10 + $0x28] sm:$0xff]
    %v1841 = vld [vmem:[%s10 + $0x30] sm:$0xff]
    %v1842 = vld [vmem:[%s10 + $0x38] sm:$0xff]
    %v1843 = vld [vmem:[%s10 + $0x40] sm:$0xff]
    %v1844 = vld [vmem:[%s10 + $0x48] sm:$0xff]
    %v1845 = vld [vmem:[%s10 + $0x50] sm:$0xff]
    %v1846 = vld [vmem:[%s10 + $0x58] sm:$0xff]
    %v1847 = vld [vmem:[%s10 + $0x60] sm:$0xff]
    %v1848 = vld [vmem:[%s10 + $0x68] sm:$0xff]
    %v1849 = vld [vmem:[%s10 + $0x70] sm:$0xff]
    %v1850 = vld [vmem:[%s10 + $0x78] sm:$0xff]
    %v1851 = vld [vmem:[%s10 + $0x80] sm:$0xff]
    %v1852 = vld [vmem:[%s10 + $0x88] sm:$0xff]
    %v1853 = vld [vmem:[%s10 + $0x90] sm:$0xff]
    %v1854 = vld [vmem:[%s10 + $0x98] sm:$0xff]
    %v1855 = vld [vmem:[%s10 + $0xa0] sm:$0xff]
    %v1856 = vld [vmem:[%s10 + $0xa8] sm:$0xff]
    %v1857 = vld [vmem:[%s10 + $0xb0] sm:$0xff]
    %v1858 = vld [vmem:[%s10 + $0xb8] sm:$0xff]
    %v1859 = vld [vmem:[%s10 + $0xc0] sm:$0xff]
    %v1860 = vld [vmem:[%s10 + $0xc8] sm:$0xff]
    %v1861 = vld [vmem:[%s10 + $0xd0] sm:$0xff]
    %v1862 = vld [vmem:[%s10 + $0xd8] sm:$0xff]
    %v1863 = vld [vmem:[%s10 + $0xe0] sm:$0xff]
    %v1864 = vld [vmem:[%s10 + $0xe8] sm:$0xff]
    %v1865 = vld [vmem:[%s10 + $0xf0] sm:$0xff]
    %v1866 = vld [vmem:[%s10 + $0xf8] sm:$0xff]
    %1867 = vmatprep.subr.mxu0 0.0
    %1868 = vmatpush1.msra.mxu0 %v1850
    %1869 = vmatprep.subr.mxu0 0.0
    %1870 = vmatpush1.msra.mxu0 %v1849
    %1871 = vmatprep.subr.mxu0 0.0
    %1872 = vmatpush1.msra.mxu0 %v1848
    %1873 = vmatprep.subr.mxu0 0.0
    %1874 = vmatpush1.msra.mxu0 %v1847
    %1875 = vmatprep.subr.mxu0 0.0
    %1876 = vmatpush1.msra.mxu0 %v1846
    %1877 = vmatprep.subr.mxu0 0.0
    %1878 = vmatpush1.msra.mxu0 %v1845
    %1879 = vmatprep.subr.mxu0 0.0
    %1880 = vmatpush1.msra.mxu0 %v1844
    %1881 = vmatprep.subr.mxu0 0.0
    %1882 = vmatpush1.msra.mxu0 %v1843
    %1883 = vmatprep.subr.mxu0 0.0
    %1884 = vmatpush1.msra.mxu0 %v1842
    %1885 = vmatprep.subr.mxu0 0.0
    %1886 = vmatpush1.msra.mxu0 %v1841
    %1887 = vmatprep.subr.mxu0 0.0
    %1888 = vmatpush1.msra.mxu0 %v1840
    %1889 = vmatprep.subr.mxu0 0.0
    %1890 = vmatpush1.msra.mxu0 %v1839
    %1891 = vmatprep.subr.mxu0 0.0
    %1892 = vmatpush1.msra.mxu0 %v1838
    %1893 = vmatprep.subr.mxu0 0.0
    %1894 = vmatpush1.msra.mxu0 %v1837
    %1895 = vmatprep.subr.mxu0 0.0
    %1896 = vmatpush1.msra.mxu0 %v1836
    %1897 = vmatprep.subr.mxu0 0.0
    %1898 = vmatpush1.msra.mxu0 %v1835
    %1899 = vmatprep.subr.mxu0 0.0
    %1900 = vmatpush2.msra.mxu0 %v1866
    %1901 = vmatprep.subr.mxu0 0.0
    %1902 = vmatpush2.msra.mxu0 %v1865
    %1903 = vmatprep.subr.mxu0 0.0
    %1904 = vmatpush2.msra.mxu0 %v1864
    %1905 = vmatprep.subr.mxu0 0.0
    %1906 = vmatpush2.msra.mxu0 %v1863
    %1907 = vmatprep.subr.mxu0 0.0
    %1908 = vmatpush2.msra.mxu0 %v1862
    %1909 = vmatprep.subr.mxu0 0.0
    %1910 = vmatpush2.msra.mxu0 %v1861
    %1911 = vmatprep.subr.mxu0 0.0
    %1912 = vmatpush2.msra.mxu0 %v1860
    %1913 = vmatprep.subr.mxu0 0.0
    %1914 = vmatpush2.msra.mxu0 %v1859
    %1915 = vmatprep.subr.mxu0 0.0
    %1916 = vmatpush2.msra.mxu0 %v1858
    %1917 = vmatprep.subr.mxu0 0.0
    %1918 = vmatpush2.msra.mxu0 %v1857
    %1919 = vmatprep.subr.mxu0 0.0
    %1920 = vmatpush2.msra.mxu0 %v1856
    %1921 = vmatprep.subr.mxu0 0.0
    %1922 = vmatpush2.msra.mxu0 %v1855
    %1923 = vmatprep.subr.mxu0 0.0
    %1924 = vmatpush2.msra.mxu0 %v1854
    %1925 = vmatprep.subr.mxu0 0.0
    %1926 = vmatpush2.msra.mxu0 %v1853
    %1927 = vmatprep.subr.mxu0 0.0
    %1928 = vmatpush2.msra.mxu0 %v1852
    %1929 = vmatprep.subr.mxu0 0.0
    %1930 = vmatpush2.msra.mxu0 %v1851
    %1931 = vmatprep.mubr.f32.mxu0 %v1832
    %1932 = vmatmul.mubr.f32.gmra.mxu0 %v1831
    %v1933 = vpop.f32.mrf.mxu0
    %v1934 = vadd.f32 0.0, %v1933
    %v1935 = vpop.f32.mrf.mxu0
    %1936 = vmatprep.mubr.f32.mxu0 %v1834
    %1937 = vmatmul.mubr.f32.gmra.mxu0 %v1833
    %v1938 = vpop.f32.mrf.mxu0
    %v1939 = vadd.f32 0.0, %v1938
    %v1940 = vpop.f32.mrf.mxu0
    %1941 = vdwg.mxu0
    %vm1942 = vcmask 15360
    %1943 = vst.msk [vmem:[%s11] sm:$0xff] %vm1942, %v1934
    %1944 = vst.msk [vmem:[%s11 + $0x8] sm:$0xff] %vm1942, %v1939
    // Predicated region
    $region62: #{tpu_custom_call.1} parent=1 // pred_check
      _
    $region63: #{tpu_custom_call.1} parent=1 // pred_check_branch
      %1946 = sbr.rel (0) target = $region65
    $region64: #{tpu_custom_call.1} parent=1 // pred_region
      _
    $region65: #{tpu_custom_call.1} parent=1 // pred_fallthru
      _
    // Predicated region
    $region66: #{tpu_custom_call.1} parent=1 // pred_check
      _
    $region67: #{tpu_custom_call.1} parent=1 // pred_check_branch
      %1948 = sbr.rel (0) target = $region69
    $region68: #{tpu_custom_call.1} parent=1 // pred_region
      _
    $region69: #{tpu_custom_call.1} parent=1 // pred_fallthru
      _
    %1949 = vsyncpa [#allocation3], 1
    %1950 = vsyncpa [#allocation5], 1
    %1951 = vsyncpa [#allocation8], 1

</llo_original>
